<compile_context>
chip_gen: v7x
topology: tpu7x:2x2x1
jax: 0.10.0
libtpu: 0.0.40
codegen_flags: <defaults>
</compile_context>

<pallas_src>
import math
import jax
import jax.numpy as jnp
from jax.experimental import pallas as pl
from jax.experimental.pallas import tpu as pltpu  # noqa: F401  (TPU backend / tuning hooks)

# ---- module-consistent small sizes ---------------------------------------------------
B, T, C = 2, 8, 32          # batch, sequence, n_embd
H = 4                       # n_head
D = C // H                  # head dim
HID = 4 * C                 # mlp_hidden_times * n_embd = 128
N = B * T                   # flattened tokens = 16
EPS = 1e-5                  # torch LayerNorm default eps

# packed weight-slab column offsets (all 128-aligned starts)
_W1_OFF = 0                 # (C, HID)   mlp first linear
_WQKV_OFF = HID             # (C, 3C)    fused q|k|v
_WP_OFF = 2 * HID           # (C, C)     attention output proj
_WBIG_COLS = 3 * HID        # 384 columns total

# lane-dense output packing geometry
_PACK_PIECES = 128 // C                 # 4 column blocks of width C per packed row
_PACK_ROWS = (N * C) // 128             # 4 packed rows for `out`
assert _PACK_PIECES * C == 128 and _PACK_ROWS * _PACK_PIECES == N
assert B * T * T == 128                 # att packs into a single 128-lane row


def _layernorm(x, eps=EPS):
    mu = jnp.mean(x, axis=-1, keepdims=True)
    var = jnp.mean((x - mu) ** 2, axis=-1, keepdims=True)
    return (x - mu) * jax.lax.rsqrt(var + eps)


def _gelu_exact(x):
    # torch nn.GELU() default = exact erf-based GELU (tanh approx would be cheaper but inexact)
    return 0.5 * x * (1.0 + jax.lax.erf(x * (1.0 / math.sqrt(2.0))))


def encoder_block_kernel(x_ref, ss_ref, wbig_ref, w2_ref, bias_ref, out_ref, att_ref):
    x = x_ref[...]                                        # (N, C) flattened (b, t) tokens

    # --- ln1: AdaLayerNorm (no-affine LN, timestep-conditioned per-batch scale/shift) ---
    x3 = x.reshape(B, T, C)
    one_plus_scale = ss_ref[0][:, None, :]                # (B, 1, C) -> broadcast per token
    shift = ss_ref[1][:, None, :]
    h = (_layernorm(x3) * one_plus_scale + shift).reshape(N, C)

    # --- FullAttention: fused QKV projection (weights sliced from the ref at use) ---
    wqkv = wbig_ref[:, _WQKV_OFF:_WQKV_OFF + 3 * C]       # (C, 3C) view
    b_qkv = bias_ref[0:1, 0:3 * C]                        # (1, 3C) view
    qkv = jnp.dot(h, wqkv, preferred_element_type=jnp.float32) + b_qkv   # (N, 3C)
    qkv3 = qkv.reshape(B, T, 3 * C)

    # restack head-major once: (H*B, T, D) so attention is ONE batched einsum pair
    q = jnp.concatenate([qkv3[:, :, hh * D:(hh + 1) * D] for hh in range(H)], axis=0)
    k = jnp.concatenate([qkv3[:, :, C + hh * D:C + (hh + 1) * D] for hh in range(H)], axis=0)
    v = jnp.concatenate([qkv3[:, :, 2 * C + hh * D:2 * C + (hh + 1) * D] for hh in range(H)], axis=0)

    s = jnp.einsum('ntd,nsd->nts', q, k,
                   preferred_element_type=jnp.float32) * (1.0 / math.sqrt(D))   # (H*B, T, T)
    s = s - jnp.max(s, axis=-1, keepdims=True)
    p = jnp.exp(s)
    # EUP approx reciprocal instead of a VALU divide (ulp-level delta vs. torch F.softmax)
    p = p * pl.reciprocal(jnp.sum(p, axis=-1, keepdims=True), approx=True)
    # attn_drop is identity in eval mode

    att = jnp.mean(p.reshape(H, B, T, T), axis=0)          # att.mean over heads -> (B, T, T)

    y = jnp.einsum('nts,nsd->ntd', p, v,
                   preferred_element_type=jnp.float32)     # (H*B, T, D)
    y4 = y.reshape(H, B, T, D)
    y2 = jnp.concatenate([y4[hh] for hh in range(H)], axis=-1).reshape(N, C)   # (N, C)

    wp = wbig_ref[:, _WP_OFF:_WP_OFF + C]                  # (C, C) view
    b_p = bias_ref[1:2, 0:C]
    a = jnp.dot(y2, wp, preferred_element_type=jnp.float32) + b_p
    # resid_drop is identity in eval mode

    x1 = x + a                                             # first residual

    # --- ln2 + MLP ---
    g2 = bias_ref[2:3, 0:C]
    bt2 = bias_ref[3:4, 0:C]
    n2 = _layernorm(x1) * g2 + bt2

    w1 = wbig_ref[:, _W1_OFF:_W1_OFF + HID]                # (C, HID) view
    b_m1 = bias_ref[4:5, :]
    hid = _gelu_exact(jnp.dot(n2, w1, preferred_element_type=jnp.float32) + b_m1)

    b_m2 = bias_ref[5:6, 0:C]
    m = jnp.dot(hid, w2_ref[...], preferred_element_type=jnp.float32) + b_m2
    # mlp dropout is identity in eval mode

    x_out = x1 + m                                         # second residual, (N, C)

    # --- lane-dense packed stores (full 128-lane vst; unpacked in the wrapper) ---
    # out_pack[i, C*j + c] = x_out[j*_PACK_ROWS + i, c]
    out_ref[...] = jnp.concatenate(
        [x_out[j * _PACK_ROWS:(j + 1) * _PACK_ROWS] for j in range(_PACK_PIECES)], axis=-1)
    # att_pack[0, (B*T)*i + T*b + s] = att[b, i, s]
    att2 = jnp.concatenate([att[0], att[1]], axis=-1)      # (T, B*T)
    att_ref[...] = jnp.concatenate([att2[i:i + 1, :] for i in range(T)], axis=-1)  # (1, 128)


def pack_params(p):
    """One-time packing of the torch-layout params into the kernel's slabs."""
    wqkv = jnp.concatenate([p["wq"], p["wk"], p["wv"]], axis=1)          # (C, 3C)
    wbig = jnp.zeros((C, _WBIG_COLS), jnp.float32)
    wbig = wbig.at[:, _W1_OFF:_W1_OFF + HID].set(p["w1"])
    wbig = wbig.at[:, _WQKV_OFF:_WQKV_OFF + 3 * C].set(wqkv)
    wbig = wbig.at[:, _WP_OFF:_WP_OFF + C].set(p["wp"])

    bias = jnp.zeros((6, HID), jnp.float32)
    bias = bias.at[0, 0:3 * C].set(jnp.concatenate([p["bq"], p["bk"], p["bv"]]))
    bias = bias.at[1, 0:C].set(p["bp"])
    bias = bias.at[2, 0:C].set(p["g2"])      # ln2 gamma
    bias = bias.at[3, 0:C].set(p["b2"])      # ln2 beta
    bias = bias.at[4, :].set(p["bb1"])       # mlp b1 (HID)
    bias = bias.at[5, 0:C].set(p["bb2"])     # mlp b2
    return {"wbig": wbig, "w2": p["w2"], "bias": bias,
            "w_ada": p["w_ada"], "b_ada": p["b_ada"]}


def _timestep_cond(timestep, packed):
    """AdaLayerNorm timestep path (tiny per-batch glue, plain JAX)."""
    half = C // 2
    # Diffusion-TS SinusoidalPosEmb uses (half_dim - 1) in the frequency exponent.
    freqs = jnp.exp(jnp.arange(half, dtype=jnp.float32)
                    * -(math.log(10000.0) / (half - 1)))
    t = timestep.astype(jnp.float32)[:, None] * freqs[None, :]           # (B, C/2)
    emb = jnp.concatenate([jnp.sin(t), jnp.cos(t)], axis=-1)             # (B, C)
    emb = jnp.dot(jax.nn.silu(emb), packed["w_ada"]) + packed["b_ada"]   # (B, 2C)
    scale, shift = emb[:, :C], emb[:, C:]
    return jnp.stack([1.0 + scale, shift], axis=0)                       # (2, B, C)


@jax.jit
def encoder_block(x, timestep, packed):
    """x: (B, T, C) f32, timestep: (B,) int32 -> (out (B,T,C), att (B,T,T))"""
    ss = _timestep_cond(timestep, packed)                                # (2, B, C)
    x_flat = x.reshape(N, C)

    # Single grid-less invocation: all operands (~66 KiB) fit VMEM with default full-array
    # blocks -> one DMA per operand, no per-step grid overhead.  When N grows, switch to a
    # token-row grid with weight BlockSpecs pinned at block (0, 0) and parallel semantics.
    out_pack, att_pack = pl.pallas_call(
        encoder_block_kernel,
        out_shape=[
            jax.ShapeDtypeStruct((_PACK_ROWS, 128), jnp.float32),   # packed out (4, 128)
            jax.ShapeDtypeStruct((1, 128), jnp.float32),            # packed att (1, 128)
        ],
    )(x_flat, ss, packed["wbig"], packed["w2"], packed["bias"])

    # unpack the lane-dense slabs back to module shapes (cheap wrapper-side layout plumbing)
    out = jnp.transpose(out_pack.reshape(_PACK_ROWS, _PACK_PIECES, C), (1, 0, 2)).reshape(B, T, C)
    att = jnp.transpose(att_pack.reshape(T, B, T), (1, 0, 2))            # (B, T, T)
    return out, att


def init_params(key):
    ks = jax.random.split(key, 11)
    n = lambda k, shape: 0.02 * jax.random.normal(k, shape, jnp.float32)
    return {
        # AdaLayerNorm linear: (C -> 2C)
        "w_ada": n(ks[0], (C, 2 * C)), "b_ada": jnp.zeros((2 * C,), jnp.float32),
        # attention projections (stored as `in x out`) + biases
        "wq": n(ks[1], (C, C)), "bq": n(ks[2], (C,)),
        "wk": n(ks[3], (C, C)), "bk": n(ks[4], (C,)),
        "wv": n(ks[5], (C, C)), "bv": n(ks[6], (C,)),
        "wp": n(ks[7], (C, C)), "bp": n(ks[8], (C,)),
        # ln2 affine
        "g2": jnp.ones((C,), jnp.float32), "b2": jnp.zeros((C,), jnp.float32),
        # mlp
        "w1": n(ks[9], (C, HID)), "bb1": jnp.zeros((HID,), jnp.float32),
        "w2": n(ks[10], (HID, C)), "bb2": jnp.zeros((C,), jnp.float32),
    }


def _reference(x, timestep, p):
    """Pure-JAX mirror of the torch EncoderBlock forward (eval mode)."""
    half = C // 2
    freqs = jnp.exp(jnp.arange(half, dtype=jnp.float32) * -(math.log(10000.0) / (half - 1)))
    t = timestep.astype(jnp.float32)[:, None] * freqs[None, :]
    emb = jnp.concatenate([jnp.sin(t), jnp.cos(t)], axis=-1)
    emb = jnp.dot(jax.nn.silu(emb), p["w_ada"]) + p["b_ada"]
    scale, shift = emb[:, :C], emb[:, C:]

    def ln(v):
        mu = v.mean(-1, keepdims=True)
        var = ((v - mu) ** 2).mean(-1, keepdims=True)
        return (v - mu) / jnp.sqrt(var + EPS)

    h = ln(x) * (1.0 + scale[:, None, :]) + shift[:, None, :]
    q = (h @ p["wq"] + p["bq"]).reshape(B, T, H, D).transpose(0, 2, 1, 3)
    k = (h @ p["wk"] + p["bk"]).reshape(B, T, H, D).transpose(0, 2, 1, 3)
    v = (h @ p["wv"] + p["bv"]).reshape(B, T, H, D).transpose(0, 2, 1, 3)
    att = (q @ jnp.swapaxes(k, -1, -2)) * (1.0 / math.sqrt(D))
    att = jax.nn.softmax(att, axis=-1)
    y = (att @ v).transpose(0, 2, 1, 3).reshape(B, T, C)
    y = y @ p["wp"] + p["bp"]
    x1 = x + y
    n2 = ln(x1) * p["g2"] + p["b2"]
    pre = n2 @ p["w1"] + p["bb1"]
    hid = 0.5 * pre * (1.0 + jax.lax.erf(pre / math.sqrt(2.0)))
    m = hid @ p["w2"] + p["bb2"]
    return x1 + m, att.mean(axis=1)


if __name__ == "__main__":
    key = jax.random.PRNGKey(0)
    kx, kp = jax.random.split(key)
    x = jax.random.normal(kx, (B, T, C), jnp.float32)
    timestep = jnp.array([3, 7], dtype=jnp.int32)
    params = init_params(kp)
    packed = pack_params(params)

    out, att = encoder_block(x, timestep, packed)
    jax.block_until_ready((out, att))

    assert out.shape == (B, T, C) and att.shape == (B, T, T)
    assert bool(jnp.all(jnp.isfinite(out))) and bool(jnp.all(jnp.isfinite(att)))

    # correctness vs pure-JAX reference (loose tol: pl.reciprocal(approx=True) in softmax)
    ref_out, ref_att = _reference(x, timestep, params)
    assert bool(jnp.allclose(out, ref_out, atol=2e-3, rtol=2e-3))
    assert bool(jnp.allclose(att, ref_att, atol=2e-3, rtol=2e-3))

    print("KERNEL_OK")
</pallas_src>

<mosaic_0001>
module attributes {stable_mosaic.version = 11 : i64} {
  func.func @encoder_block_kernel(%arg0: memref<16x32xf32, #tpu.memory_space<vmem>>, %arg1: memref<2x2x32xf32, #tpu.memory_space<vmem>>, %arg2: memref<32x384xf32, #tpu.memory_space<vmem>>, %arg3: memref<128x32xf32, #tpu.memory_space<vmem>>, %arg4: memref<6x128xf32, #tpu.memory_space<vmem>>, %arg5: memref<4x128xf32, #tpu.memory_space<vmem>>, %arg6: memref<1x128xf32, #tpu.memory_space<vmem>>) attributes {dimension_semantics = [], scalar_prefetch = 0 : i64, scratch_operands = 0 : i64, tpu.core_type = #tpu.core_type<tc>} {
    %c0 = arith.constant 0 : index
    %c0_0 = arith.constant 0 : index
    %0 = vector.load %arg0[%c0, %c0_0] : memref<16x32xf32, #tpu.memory_space<vmem>>, vector<16x32xf32>
    %1 = vector.shape_cast %0 : vector<16x32xf32> to vector<2x8x32xf32>
    %c0_1 = arith.constant 0 : index
    %c0_2 = arith.constant 0 : index
    %c0_3 = arith.constant 0 : index
    %2 = vector.load %arg1[%c0_1, %c0_2, %c0_3] : memref<2x2x32xf32, #tpu.memory_space<vmem>>, vector<1x2x32xf32>
    %3 = vector.shape_cast %2 : vector<1x2x32xf32> to vector<2x32xf32>
    %4 = vector.shape_cast %3 : vector<2x32xf32> to vector<2x1x32xf32>
    %c1 = arith.constant 1 : index
    %c0_4 = arith.constant 0 : index
    %c0_5 = arith.constant 0 : index
    %5 = vector.load %arg1[%c1, %c0_4, %c0_5] : memref<2x2x32xf32, #tpu.memory_space<vmem>>, vector<1x2x32xf32>
    %6 = vector.shape_cast %5 : vector<1x2x32xf32> to vector<2x32xf32>
    %7 = vector.shape_cast %6 : vector<2x32xf32> to vector<2x1x32xf32>
    %cst = arith.constant dense<0.000000e+00> : vector<2x8xf32>
    %8 = vector.multi_reduction <add>, %1, %cst [2] : vector<2x8x32xf32> to vector<2x8xf32>
    %9 = vector.shape_cast %8 : vector<2x8xf32> to vector<2x8x1xf32>
    %cst_6 = arith.constant 3.200000e+01 : f32
    %10 = vector.broadcast %cst_6 : f32 to vector<2x8x1xf32>
    %11 = arith.divf %9, %10 : vector<2x8x1xf32>
    %12 = vector.broadcast %11 : vector<2x8x1xf32> to vector<2x8x32xf32>
    %13 = arith.subf %1, %12 : vector<2x8x32xf32>
    %14 = arith.mulf %13, %13 : vector<2x8x32xf32>
    %cst_7 = arith.constant dense<0.000000e+00> : vector<2x8xf32>
    %15 = vector.multi_reduction <add>, %14, %cst_7 [2] : vector<2x8x32xf32> to vector<2x8xf32>
    %16 = vector.shape_cast %15 : vector<2x8xf32> to vector<2x8x1xf32>
    %cst_8 = arith.constant 3.200000e+01 : f32
    %17 = vector.broadcast %cst_8 : f32 to vector<2x8x1xf32>
    %18 = arith.divf %16, %17 : vector<2x8x1xf32>
    %19 = vector.broadcast %11 : vector<2x8x1xf32> to vector<2x8x32xf32>
    %20 = arith.subf %1, %19 : vector<2x8x32xf32>
    %cst_9 = arith.constant 9.99999974E-6 : f32
    %21 = vector.broadcast %cst_9 : f32 to vector<2x8x1xf32>
    %22 = arith.addf %18, %21 : vector<2x8x1xf32>
    %23 = math.rsqrt %22 : vector<2x8x1xf32>
    %24 = vector.broadcast %23 : vector<2x8x1xf32> to vector<2x8x32xf32>
    %25 = arith.mulf %20, %24 : vector<2x8x32xf32>
    %26 = vector.broadcast %4 : vector<2x1x32xf32> to vector<2x8x32xf32>
    %27 = arith.mulf %25, %26 : vector<2x8x32xf32>
    %28 = vector.broadcast %7 : vector<2x1x32xf32> to vector<2x8x32xf32>
    %29 = arith.addf %27, %28 : vector<2x8x32xf32>
    %30 = vector.shape_cast %29 : vector<2x8x32xf32> to vector<16x32xf32>
    %c0_10 = arith.constant 0 : index
    %c128 = arith.constant 128 : index
    %31 = vector.load %arg2[%c0_10, %c128] : memref<32x384xf32, #tpu.memory_space<vmem>>, vector<32x96xf32>
    %c0_11 = arith.constant 0 : index
    %c0_12 = arith.constant 0 : index
    %32 = vector.load %arg4[%c0_11, %c0_12] : memref<6x128xf32, #tpu.memory_space<vmem>>, vector<1x96xf32>
    %cst_13 = arith.constant dense<0.000000e+00> : vector<16x96xf32>
    %33 = tpu.matmul %30, %31, %cst_13 {dimension_numbers = #tpu.dot_dimension_numbers<[1], [0], [0], [1], [0, 0, 1, 1], [], []>} : vector<16x32xf32>, vector<32x96xf32>, vector<16x96xf32> -> vector<16x96xf32>
    %34 = vector.broadcast %32 : vector<1x96xf32> to vector<16x96xf32>
    %35 = arith.addf %33, %34 : vector<16x96xf32>
    %36 = vector.shape_cast %35 : vector<16x96xf32> to vector<2x8x96xf32>
    %37 = vector.extract_strided_slice %36 {offsets = [0, 0, 0], sizes = [2, 8, 8], strides = [1, 1, 1]} : vector<2x8x96xf32> to vector<2x8x8xf32>
    %38 = vector.extract_strided_slice %36 {offsets = [0, 0, 8], sizes = [2, 8, 8], strides = [1, 1, 1]} : vector<2x8x96xf32> to vector<2x8x8xf32>
    %39 = vector.extract_strided_slice %36 {offsets = [0, 0, 16], sizes = [2, 8, 8], strides = [1, 1, 1]} : vector<2x8x96xf32> to vector<2x8x8xf32>
    %40 = vector.extract_strided_slice %36 {offsets = [0, 0, 24], sizes = [2, 8, 8], strides = [1, 1, 1]} : vector<2x8x96xf32> to vector<2x8x8xf32>
    %41 = tpu.concatenate %37, %38, %39, %40 in 0 : vector<2x8x8xf32>, vector<2x8x8xf32>, vector<2x8x8xf32>, vector<2x8x8xf32> -> vector<8x8x8xf32>
    %42 = vector.extract_strided_slice %36 {offsets = [0, 0, 32], sizes = [2, 8, 8], strides = [1, 1, 1]} : vector<2x8x96xf32> to vector<2x8x8xf32>
    %43 = vector.extract_strided_slice %36 {offsets = [0, 0, 40], sizes = [2, 8, 8], strides = [1, 1, 1]} : vector<2x8x96xf32> to vector<2x8x8xf32>
    %44 = vector.extract_strided_slice %36 {offsets = [0, 0, 48], sizes = [2, 8, 8], strides = [1, 1, 1]} : vector<2x8x96xf32> to vector<2x8x8xf32>
    %45 = vector.extract_strided_slice %36 {offsets = [0, 0, 56], sizes = [2, 8, 8], strides = [1, 1, 1]} : vector<2x8x96xf32> to vector<2x8x8xf32>
    %46 = tpu.concatenate %42, %43, %44, %45 in 0 : vector<2x8x8xf32>, vector<2x8x8xf32>, vector<2x8x8xf32>, vector<2x8x8xf32> -> vector<8x8x8xf32>
    %47 = vector.extract_strided_slice %36 {offsets = [0, 0, 64], sizes = [2, 8, 8], strides = [1, 1, 1]} : vector<2x8x96xf32> to vector<2x8x8xf32>
    %48 = vector.extract_strided_slice %36 {offsets = [0, 0, 72], sizes = [2, 8, 8], strides = [1, 1, 1]} : vector<2x8x96xf32> to vector<2x8x8xf32>
    %49 = vector.extract_strided_slice %36 {offsets = [0, 0, 80], sizes = [2, 8, 8], strides = [1, 1, 1]} : vector<2x8x96xf32> to vector<2x8x8xf32>
    %50 = vector.extract_strided_slice %36 {offsets = [0, 0, 88], sizes = [2, 8, 8], strides = [1, 1, 1]} : vector<2x8x96xf32> to vector<2x8x8xf32>
    %51 = tpu.concatenate %47, %48, %49, %50 in 0 : vector<2x8x8xf32>, vector<2x8x8xf32>, vector<2x8x8xf32>, vector<2x8x8xf32> -> vector<8x8x8xf32>
    "tpu.trace_start"() <{level = 10 : i32, message = "ntd,nsd->nts"}> : () -> ()
    %cst_14 = arith.constant dense<0.000000e+00> : vector<8x8x8xf32>
    %52 = tpu.matmul %41, %46, %cst_14 {dimension_numbers = #tpu.dot_dimension_numbers<[2], [2], [1], [1], [0, 0, 0, 1, 1, 1], [0], [0]>} : vector<8x8x8xf32>, vector<8x8x8xf32>, vector<8x8x8xf32> -> vector<8x8x8xf32>
    "tpu.trace_stop"() : () -> ()
    %cst_15 = arith.constant 0.353553385 : f32
    %53 = vector.broadcast %cst_15 : f32 to vector<8x8x8xf32>
    %54 = arith.mulf %52, %53 : vector<8x8x8xf32>
    %cst_16 = arith.constant dense<0xFF800000> : vector<8x8xf32>
    %55 = vector.multi_reduction <maximumf>, %54, %cst_16 [2] : vector<8x8x8xf32> to vector<8x8xf32>
    %56 = vector.shape_cast %55 : vector<8x8xf32> to vector<8x8x1xf32>
    %57 = vector.broadcast %56 : vector<8x8x1xf32> to vector<8x8x8xf32>
    %58 = arith.subf %54, %57 : vector<8x8x8xf32>
    %59 = math.exp %58 : vector<8x8x8xf32>
    %cst_17 = arith.constant dense<0.000000e+00> : vector<8x8xf32>
    %60 = vector.multi_reduction <add>, %59, %cst_17 [2] : vector<8x8x8xf32> to vector<8x8xf32>
    %61 = vector.shape_cast %60 : vector<8x8xf32> to vector<8x8x1xf32>
    %62 = tpu.reciprocal %61 {approx = true} : vector<8x8x1xf32> -> vector<8x8x1xf32>
    %63 = vector.broadcast %62 : vector<8x8x1xf32> to vector<8x8x8xf32>
    %64 = arith.mulf %59, %63 : vector<8x8x8xf32>
    %65 = vector.shape_cast %64 : vector<8x8x8xf32> to vector<4x2x8x8xf32>
    %cst_18 = arith.constant dense<0.000000e+00> : vector<2x8x8xf32>
    %66 = vector.multi_reduction <add>, %65, %cst_18 [0] : vector<4x2x8x8xf32> to vector<2x8x8xf32>
    %cst_19 = arith.constant 4.000000e+00 : f32
    %67 = vector.broadcast %cst_19 : f32 to vector<2x8x8xf32>
    %68 = arith.divf %66, %67 : vector<2x8x8xf32>
    "tpu.trace_start"() <{level = 10 : i32, message = "nts,nsd->ntd"}> : () -> ()
    %cst_20 = arith.constant dense<0.000000e+00> : vector<8x8x8xf32>
    %69 = tpu.matmul %64, %51, %cst_20 {dimension_numbers = #tpu.dot_dimension_numbers<[2], [1], [1], [2], [0, 0, 0, 1, 1, 2], [0], [0]>} : vector<8x8x8xf32>, vector<8x8x8xf32>, vector<8x8x8xf32> -> vector<8x8x8xf32>
    "tpu.trace_stop"() : () -> ()
    %70 = vector.shape_cast %69 : vector<8x8x8xf32> to vector<4x2x8x8xf32>
    %71 = vector.extract_strided_slice %70 {offsets = [0, 0, 0, 0], sizes = [1, 2, 8, 8], strides = [1, 1, 1, 1]} : vector<4x2x8x8xf32> to vector<1x2x8x8xf32>
    %72 = vector.shape_cast %71 : vector<1x2x8x8xf32> to vector<2x8x8xf32>
    %73 = vector.extract_strided_slice %70 {offsets = [1, 0, 0, 0], sizes = [1, 2, 8, 8], strides = [1, 1, 1, 1]} : vector<4x2x8x8xf32> to vector<1x2x8x8xf32>
    %74 = vector.shape_cast %73 : vector<1x2x8x8xf32> to vector<2x8x8xf32>
    %75 = vector.extract_strided_slice %70 {offsets = [2, 0, 0, 0], sizes = [1, 2, 8, 8], strides = [1, 1, 1, 1]} : vector<4x2x8x8xf32> to vector<1x2x8x8xf32>
    %76 = vector.shape_cast %75 : vector<1x2x8x8xf32> to vector<2x8x8xf32>
    %77 = vector.extract_strided_slice %70 {offsets = [3, 0, 0, 0], sizes = [1, 2, 8, 8], strides = [1, 1, 1, 1]} : vector<4x2x8x8xf32> to vector<1x2x8x8xf32>
    %78 = vector.shape_cast %77 : vector<1x2x8x8xf32> to vector<2x8x8xf32>
    %79 = tpu.concatenate %72, %74, %76, %78 in 2 : vector<2x8x8xf32>, vector<2x8x8xf32>, vector<2x8x8xf32>, vector<2x8x8xf32> -> vector<2x8x32xf32>
    %80 = vector.shape_cast %79 : vector<2x8x32xf32> to vector<16x32xf32>
    %c0_21 = arith.constant 0 : index
    %c256 = arith.constant 256 : index
    %81 = vector.load %arg2[%c0_21, %c256] : memref<32x384xf32, #tpu.memory_space<vmem>>, vector<32x32xf32>
    %c1_22 = arith.constant 1 : index
    %c0_23 = arith.constant 0 : index
    %82 = vector.load %arg4[%c1_22, %c0_23] : memref<6x128xf32, #tpu.memory_space<vmem>>, vector<1x32xf32>
    %cst_24 = arith.constant dense<0.000000e+00> : vector<16x32xf32>
    %83 = tpu.matmul %80, %81, %cst_24 {dimension_numbers = #tpu.dot_dimension_numbers<[1], [0], [0], [1], [0, 0, 1, 1], [], []>} : vector<16x32xf32>, vector<32x32xf32>, vector<16x32xf32> -> vector<16x32xf32>
    %84 = vector.broadcast %82 : vector<1x32xf32> to vector<16x32xf32>
    %85 = arith.addf %83, %84 : vector<16x32xf32>
    %86 = arith.addf %0, %85 : vector<16x32xf32>
    %c2 = arith.constant 2 : index
    %c0_25 = arith.constant 0 : index
    %87 = vector.load %arg4[%c2, %c0_25] : memref<6x128xf32, #tpu.memory_space<vmem>>, vector<1x32xf32>
    %c3 = arith.constant 3 : index
    %c0_26 = arith.constant 0 : index
    %88 = vector.load %arg4[%c3, %c0_26] : memref<6x128xf32, #tpu.memory_space<vmem>>, vector<1x32xf32>
    %cst_27 = arith.constant dense<0.000000e+00> : vector<16xf32>
    %89 = vector.multi_reduction <add>, %86, %cst_27 [1] : vector<16x32xf32> to vector<16xf32>
    %90 = vector.shape_cast %89 : vector<16xf32> to vector<16x1xf32>
    %cst_28 = arith.constant 3.200000e+01 : f32
    %91 = vector.broadcast %cst_28 : f32 to vector<16x1xf32>
    %92 = arith.divf %90, %91 : vector<16x1xf32>
    %93 = vector.broadcast %92 : vector<16x1xf32> to vector<16x32xf32>
    %94 = arith.subf %86, %93 : vector<16x32xf32>
    %95 = arith.mulf %94, %94 : vector<16x32xf32>
    %cst_29 = arith.constant dense<0.000000e+00> : vector<16xf32>
    %96 = vector.multi_reduction <add>, %95, %cst_29 [1] : vector<16x32xf32> to vector<16xf32>
    %97 = vector.shape_cast %96 : vector<16xf32> to vector<16x1xf32>
    %cst_30 = arith.constant 3.200000e+01 : f32
    %98 = vector.broadcast %cst_30 : f32 to vector<16x1xf32>
    %99 = arith.divf %97, %98 : vector<16x1xf32>
    %100 = vector.broadcast %92 : vector<16x1xf32> to vector<16x32xf32>
    %101 = arith.subf %86, %100 : vector<16x32xf32>
    %cst_31 = arith.constant 9.99999974E-6 : f32
    %102 = vector.broadcast %cst_31 : f32 to vector<16x1xf32>
    %103 = arith.addf %99, %102 : vector<16x1xf32>
    %104 = math.rsqrt %103 : vector<16x1xf32>
    %105 = vector.broadcast %104 : vector<16x1xf32> to vector<16x32xf32>
    %106 = arith.mulf %101, %105 : vector<16x32xf32>
    %107 = vector.broadcast %87 : vector<1x32xf32> to vector<16x32xf32>
    %108 = arith.mulf %106, %107 : vector<16x32xf32>
    %109 = vector.broadcast %88 : vector<1x32xf32> to vector<16x32xf32>
    %110 = arith.addf %108, %109 : vector<16x32xf32>
    %c0_32 = arith.constant 0 : index
    %c0_33 = arith.constant 0 : index
    %111 = vector.load %arg2[%c0_32, %c0_33] : memref<32x384xf32, #tpu.memory_space<vmem>>, vector<32x128xf32>
    %c4 = arith.constant 4 : index
    %c0_34 = arith.constant 0 : index
    %112 = vector.load %arg4[%c4, %c0_34] : memref<6x128xf32, #tpu.memory_space<vmem>>, vector<1x128xf32>
    %cst_35 = arith.constant dense<0.000000e+00> : vector<16x128xf32>
    %113 = tpu.matmul %110, %111, %cst_35 {dimension_numbers = #tpu.dot_dimension_numbers<[1], [0], [0], [1], [0, 0, 1, 1], [], []>} : vector<16x32xf32>, vector<32x128xf32>, vector<16x128xf32> -> vector<16x128xf32>
    %114 = vector.broadcast %112 : vector<1x128xf32> to vector<16x128xf32>
    %115 = arith.addf %113, %114 : vector<16x128xf32>
    %cst_36 = arith.constant 5.000000e-01 : f32
    %116 = vector.broadcast %cst_36 : f32 to vector<16x128xf32>
    %117 = arith.mulf %116, %115 : vector<16x128xf32>
    %cst_37 = arith.constant 0.707106769 : f32
    %118 = vector.broadcast %cst_37 : f32 to vector<16x128xf32>
    %119 = arith.mulf %115, %118 : vector<16x128xf32>
    %120 = math.erf %119 : vector<16x128xf32>
    %cst_38 = arith.constant 1.000000e+00 : f32
    %121 = vector.broadcast %cst_38 : f32 to vector<16x128xf32>
    %122 = arith.addf %121, %120 : vector<16x128xf32>
    %123 = arith.mulf %117, %122 : vector<16x128xf32>
    %c5 = arith.constant 5 : index
    %c0_39 = arith.constant 0 : index
    %124 = vector.load %arg4[%c5, %c0_39] : memref<6x128xf32, #tpu.memory_space<vmem>>, vector<1x32xf32>
    %c0_40 = arith.constant 0 : index
    %c0_41 = arith.constant 0 : index
    %125 = vector.load %arg3[%c0_40, %c0_41] : memref<128x32xf32, #tpu.memory_space<vmem>>, vector<128x32xf32>
    %cst_42 = arith.constant dense<0.000000e+00> : vector<16x32xf32>
    %126 = tpu.matmul %123, %125, %cst_42 {dimension_numbers = #tpu.dot_dimension_numbers<[1], [0], [0], [1], [0, 0, 1, 1], [], []>} : vector<16x128xf32>, vector<128x32xf32>, vector<16x32xf32> -> vector<16x32xf32>
    %127 = vector.broadcast %124 : vector<1x32xf32> to vector<16x32xf32>
    %128 = arith.addf %126, %127 : vector<16x32xf32>
    %129 = arith.addf %86, %128 : vector<16x32xf32>
    %130 = vector.extract_strided_slice %129 {offsets = [0, 0], sizes = [4, 32], strides = [1, 1]} : vector<16x32xf32> to vector<4x32xf32>
    %131 = vector.extract_strided_slice %129 {offsets = [4, 0], sizes = [4, 32], strides = [1, 1]} : vector<16x32xf32> to vector<4x32xf32>
    %132 = vector.extract_strided_slice %129 {offsets = [8, 0], sizes = [4, 32], strides = [1, 1]} : vector<16x32xf32> to vector<4x32xf32>
    %133 = vector.extract_strided_slice %129 {offsets = [12, 0], sizes = [4, 32], strides = [1, 1]} : vector<16x32xf32> to vector<4x32xf32>
    %134 = tpu.concatenate %130, %131, %132, %133 in 1 : vector<4x32xf32>, vector<4x32xf32>, vector<4x32xf32>, vector<4x32xf32> -> vector<4x128xf32>
    %c0_43 = arith.constant 0 : index
    %c0_44 = arith.constant 0 : index
    %135 = vector.load %arg5[%c0_43, %c0_44] : memref<4x128xf32, #tpu.memory_space<vmem>>, vector<4x128xf32>
    tpu.vector_store %arg5[%c0_43, %c0_44], %134 {strides = array<i32>} : memref<4x128xf32, #tpu.memory_space<vmem>>, vector<4x128xf32>,
    %136 = vector.extract_strided_slice %68 {offsets = [0, 0, 0], sizes = [1, 8, 8], strides = [1, 1, 1]} : vector<2x8x8xf32> to vector<1x8x8xf32>
    %137 = vector.shape_cast %136 : vector<1x8x8xf32> to vector<8x8xf32>
    %138 = vector.extract_strided_slice %68 {offsets = [1, 0, 0], sizes = [1, 8, 8], strides = [1, 1, 1]} : vector<2x8x8xf32> to vector<1x8x8xf32>
    %139 = vector.shape_cast %138 : vector<1x8x8xf32> to vector<8x8xf32>
    %140 = tpu.concatenate %137, %139 in 1 : vector<8x8xf32>, vector<8x8xf32> -> vector<8x16xf32>
    %141 = vector.extract_strided_slice %140 {offsets = [0, 0], sizes = [1, 16], strides = [1, 1]} : vector<8x16xf32> to vector<1x16xf32>
    %142 = vector.extract_strided_slice %140 {offsets = [1, 0], sizes = [1, 16], strides = [1, 1]} : vector<8x16xf32> to vector<1x16xf32>
    %143 = vector.extract_strided_slice %140 {offsets = [2, 0], sizes = [1, 16], strides = [1, 1]} : vector<8x16xf32> to vector<1x16xf32>
    %144 = vector.extract_strided_slice %140 {offsets = [3, 0], sizes = [1, 16], strides = [1, 1]} : vector<8x16xf32> to vector<1x16xf32>
    %145 = vector.extract_strided_slice %140 {offsets = [4, 0], sizes = [1, 16], strides = [1, 1]} : vector<8x16xf32> to vector<1x16xf32>
    %146 = vector.extract_strided_slice %140 {offsets = [5, 0], sizes = [1, 16], strides = [1, 1]} : vector<8x16xf32> to vector<1x16xf32>
    %147 = vector.extract_strided_slice %140 {offsets = [6, 0], sizes = [1, 16], strides = [1, 1]} : vector<8x16xf32> to vector<1x16xf32>
    %148 = vector.extract_strided_slice %140 {offsets = [7, 0], sizes = [1, 16], strides = [1, 1]} : vector<8x16xf32> to vector<1x16xf32>
    %149 = tpu.concatenate %141, %142, %143, %144, %145, %146, %147, %148 in 1 : vector<1x16xf32>, vector<1x16xf32>, vector<1x16xf32>, vector<1x16xf32>, vector<1x16xf32>, vector<1x16xf32>, vector<1x16xf32>, vector<1x16xf32> -> vector<1x128xf32>
    %c0_45 = arith.constant 0 : index
    %c0_46 = arith.constant 0 : index
    %150 = vector.load %arg6[%c0_45, %c0_46] : memref<1x128xf32, #tpu.memory_space<vmem>>, vector<1x128xf32>
    tpu.vector_store %arg6[%c0_45, %c0_46], %149 {strides = array<i32>} : memref<1x128xf32, #tpu.memory_space<vmem>>, vector<1x128xf32>,
    return
  }
}

</mosaic_0001>

<llo_original>
// kernel: encoder_block.1
$region0: #{encoder_block.1}
  #allocation0 [shape = 'u32[]', space=smem, size = 0x4, offset = 0x4, fixed_abs, tag = 'smem constant byte address 0x4 - core index']
  #allocation1 [shape = 'u32[144,128]{1,0:T(1,128)}', space=vmem, size = 0x12000, scoped, tag = 'internal scratch']
  %s0 = inlined_call_operand.vmem [shape: f32[16,32], index: 0, kind: input, shape index: {}]
  %s1 = inlined_call_operand.vmem [shape: f32[2,2,32], index: 1, kind: input, shape index: {}]
  %s2 = inlined_call_operand.vmem [shape: f32[32,384], index: 2, kind: input, shape index: {}]
  %s3 = inlined_call_operand.vmem [shape: f32[128,32], index: 3, kind: input, shape index: {}]
  %s4 = inlined_call_operand.vmem [shape: f32[6,128], index: 4, kind: input, shape index: {}]
  %s5 = inlined_call_operand.vmem [shape: f32[4,128], index: 5, kind: output, shape index: {0}]
  %s6 = inlined_call_operand.vmem [shape: f32[1,128], index: 6, kind: output, shape index: {1}]
  %7 = xla_tuple %s5, %s6
  %s8 = sld [smem:[#allocation0]]
  $region38: #{encoder_block.1} parent=0
    _
  %s10 = ssub.s32 1, %s8
  %s11 = scalar_select 0, %s10, %s8
  // Predicated region
  $region2: #{encoder_block.1} parent=0 // pred_check
    _
  $region3: #{encoder_block.1} parent=0 // pred_check_branch
    %13 = sbr.rel (0) target = $region5
  $region4: #{encoder_block.1} parent=0 // pred_region
    _
  $region5: #{encoder_block.1} parent=0 // pred_fallthru
    _
  // Predicated region
  $region6: #{encoder_block.1} parent=0 // pred_check
    _
  $region7: #{encoder_block.1} parent=0 // pred_check_branch
    %15 = sbr.rel (0) target = $region9
  $region8: #{encoder_block.1} parent=0 // pred_region
    _
  $region9: #{encoder_block.1} parent=0 // pred_fallthru
    _
  // Predicated region
  $region10: #{encoder_block.1} parent=0 // pred_check
    _
  $region11: #{encoder_block.1} parent=0 // pred_check_branch
    %17 = sbr.rel (0) target = $region13
  $region12: #{encoder_block.1} parent=0 // pred_region
    _
  $region13: #{encoder_block.1} parent=0 // pred_fallthru
    _
  // Predicated region
  $region14: #{encoder_block.1} parent=0 // pred_check
    _
  $region15: #{encoder_block.1} parent=0 // pred_check_branch
    %19 = sbr.rel (0) target = $region17
  $region16: #{encoder_block.1} parent=0 // pred_region
    _
  $region17: #{encoder_block.1} parent=0 // pred_fallthru
    _
  // Predicated region
  $region18: #{encoder_block.1} parent=0 // pred_check
    _
  $region19: #{encoder_block.1} parent=0 // pred_check_branch
    %21 = sbr.rel (0) target = $region21
  $region20: #{encoder_block.1} parent=0 // pred_region
    _
  $region21: #{encoder_block.1} parent=0 // pred_fallthru
    _
  %v22 = vld [vmem:[%s0] sm:$0xff]
  %v23 = vld [vmem:[%s0 + $0x8] sm:$0xff]
  %v24 = vld [vmem:[%s1] sm:$0x3]
  %v27 = vunpack.c.l.s4 1966171168
  %v28 = vunpack.c.0.s8 %v27
  %v29 = vlaneseq
  %v30 = vshrl.u32 %v29, 7
  %v31 = vsub.s32 %v28, %v30
  %v32 = vrot.slane %v24, %v31
  %v33 = vcombine.high %v32, %v32
  %v35 = vunpack.c.l.s4 1966171168
  %v36 = vunpack.c.0.s8 %v35
  %v37 = vlaneseq
  %v38 = vshrl.u32 %v37, 7
  %v39 = vsub.s32 %v36, %v38
  %v40 = vrot.slane %v32, %v39
  %v42 = vunpack.c.l.s4 1966171168
  %v43 = vunpack.c.0.s8 %v42
  %v44 = vlaneseq
  %v45 = vshrl.u32 %v44, 7
  %v46 = vsub.s32 %v43, %v45
  %v47 = vrot.slane %v33, %v46
  %s48 = scalar_lea.vmem %s1, 2
  %v49 = vld [vmem:[%s48] sm:$0x3]
  %v52 = vunpack.c.l.s4 1966171168
  %v53 = vunpack.c.0.s8 %v52
  %v54 = vlaneseq
  %v55 = vshrl.u32 %v54, 7
  %v56 = vsub.s32 %v53, %v55
  %v57 = vrot.slane %v49, %v56
  %v58 = vcombine.high %v57, %v57
  %v60 = vunpack.c.l.s4 1966171168
  %v61 = vunpack.c.0.s8 %v60
  %v62 = vlaneseq
  %v63 = vshrl.u32 %v62, 7
  %v64 = vsub.s32 %v61, %v63
  %v65 = vrot.slane %v57, %v64
  %v67 = vunpack.c.l.s4 1966171168
  %v68 = vunpack.c.0.s8 %v67
  %v69 = vlaneseq
  %v70 = vshrl.u32 %v69, 7
  %v71 = vsub.s32 %v68, %v70
  %v72 = vrot.slane %v58, %v71
  %vm73 = vcmask 261120
  %v74 = vsel %vm73, %v22, 0.0
  %75 = vadd.xlane.f32.xlu0 %v74
  %v76 = vpop.xlane.xlu0 %75
  %v77 = vsel %vm73, %v23, 0.0
  %78 = vadd.xlane.f32.xlu0 %v77
  %v79 = vpop.xlane.xlu0 %78
  %v80 = vrcp.pop 32.0
  %v81 = vmul.f32 %v76, %v80
  %v82 = vmul.f32 %v79, %v80
  %v83 = vsub.f32 %v22, %v81
  %v84 = vsub.f32 %v23, %v82
  %v85 = vmul.f32 %v83, %v83
  %v86 = vmul.f32 %v84, %v84
  %v87 = vsel %vm73, %v85, 0.0
  %88 = vadd.xlane.f32.xlu0 %v87
  %v89 = vpop.xlane.xlu0 %88
  %v90 = vsel %vm73, %v86, 0.0
  %91 = vadd.xlane.f32.xlu0 %v90
  %v92 = vpop.xlane.xlu0 %91
  %v93 = vmul.f32 %v89, %v80
  %v94 = vmul.f32 %v92, %v80
  %v95 = vadd.f32 %v93, 1e-05
  %v96 = vadd.f32 %v94, 1e-05
  %v97 = vrsqrt.pop %v95
  %v98 = vrsqrt.pop %v96
  %v99 = vmul.f32 %v83, %v97
  %v100 = vmul.f32 %v84, %v98
  %v101 = vlaneseq
  %v102 = vshrl.u32 %v101, 7
  %v103 = vsub.s32 0, %v102
  %v104 = vrot.slane %v40, %v103
  %v105 = vlaneseq
  %v106 = vshrl.u32 %v105, 7
  %v107 = vsub.s32 0, %v106
  %v108 = vrot.slane %v47, %v107
  %v111 = vmul.f32 %v99, %v104
  %v112 = vmul.f32 %v100, %v108
  %v113 = vlaneseq
  %v114 = vshrl.u32 %v113, 7
  %v115 = vsub.s32 0, %v114
  %v116 = vrot.slane %v65, %v115
  %v117 = vlaneseq
  %v118 = vshrl.u32 %v117, 7
  %v119 = vsub.s32 0, %v118
  %v120 = vrot.slane %v72, %v119
  %v123 = vadd.f32 %v111, %v116
  %v124 = vadd.f32 %v112, %v120
  %v125 = vld [vmem:[%s2 + $0x8] sm:$0xff]
  %v126 = vld [vmem:[%s2 + $0x20] sm:$0xff]
  %v127 = vld [vmem:[%s2 + $0x38] sm:$0xff]
  %v128 = vld [vmem:[%s2 + $0x50] sm:$0xff]
  %v129 = vld [vmem:[%s4] sm:$0x1]
  %v130 = vlaneseq
  %v131 = vshrl.u32 %v130, 7
  %v132 = vsub.s32 0, %v131
  %v133 = vrot.slane %v129, %v132
  %v135 = vsel %vm73, %v123, 0
  %v138 = vsel %vm73, %v124, 0
  %140 = vmatprep.subr.mxu0 0.0
  %141 = vmatpush1.msra.mxu0 %v125
  %142 = vmatprep.subr.mxu0 0.0
  %143 = vmatpush1.msra.mxu0 %v126
  %144 = vmatprep.subr.mxu0 0.0
  %145 = vmatpush1.msra.mxu0 %v127
  %146 = vmatprep.subr.mxu0 0.0
  %147 = vmatpush1.msra.mxu0 %v128
  %148 = vmatprep.subr.mxu0 0.0
  %149 = vmatpush1.msra.mxu0 0.0
  %150 = vmatprep.subr.mxu0 0.0
  %151 = vmatpush1.msra.mxu0 0.0
  %152 = vmatprep.subr.mxu0 0.0
  %153 = vmatpush1.msra.mxu0 0.0
  %154 = vmatprep.subr.mxu0 0.0
  %155 = vmatpush1.msra.mxu0 0.0
  %156 = vmatprep.subr.mxu0 0.0
  %157 = vmatpush1.msra.mxu0 0.0
  %158 = vmatprep.subr.mxu0 0.0
  %159 = vmatpush1.msra.mxu0 0.0
  %160 = vmatprep.subr.mxu0 0.0
  %161 = vmatpush1.msra.mxu0 0.0
  %162 = vmatprep.subr.mxu0 0.0
  %163 = vmatpush1.msra.mxu0 0.0
  %164 = vmatprep.subr.mxu0 0.0
  %165 = vmatpush1.msra.mxu0 0.0
  %166 = vmatprep.subr.mxu0 0.0
  %167 = vmatpush1.msra.mxu0 0.0
  %168 = vmatprep.subr.mxu0 0.0
  %169 = vmatpush1.msra.mxu0 0.0
  %170 = vmatprep.subr.mxu0 0.0
  %171 = vmatpush1.msra.mxu0 0.0
  %172 = vmatprep.subr.mxu0 0.0
  %173 = vmatpush1.msra.mxu0 0.0
  %174 = vmatprep.subr.mxu0 0.0
  %175 = vmatpush1.msra.mxu0 0.0
  %176 = vmatprep.subr.mxu0 0.0
  %177 = vmatpush1.msra.mxu0 0.0
  %178 = vmatprep.subr.mxu0 0.0
  %179 = vmatpush1.msra.mxu0 0.0
  %180 = vmatprep.subr.mxu0 0.0
  %181 = vmatpush1.msra.mxu0 0.0
  %182 = vmatprep.subr.mxu0 0.0
  %183 = vmatpush1.msra.mxu0 0.0
  %184 = vmatprep.subr.mxu0 0.0
  %185 = vmatpush1.msra.mxu0 0.0
  %186 = vmatprep.subr.mxu0 0.0
  %187 = vmatpush1.msra.mxu0 0.0
  %188 = vmatprep.subr.mxu0 0.0
  %189 = vmatpush1.msra.mxu0 0.0
  %190 = vmatprep.subr.mxu0 0.0
  %191 = vmatpush1.msra.mxu0 0.0
  %192 = vmatprep.subr.mxu0 0.0
  %193 = vmatpush1.msra.mxu0 0.0
  %194 = vmatprep.subr.mxu0 0.0
  %195 = vmatpush1.msra.mxu0 0.0
  %196 = vmatprep.subr.mxu0 0.0
  %197 = vmatpush1.msra.mxu0 0.0
  %198 = vmatprep.subr.mxu0 0.0
  %199 = vmatpush1.msra.mxu0 0.0
  %200 = vmatprep.subr.mxu0 0.0
  %201 = vmatpush1.msra.mxu0 0.0
  %202 = vmatprep.subr.mxu0 0.0
  %203 = vmatpush1.msra.mxu0 0.0
  %204 = vmatprep.mubr.f32.mxu0 0.0
  %205 = vmatmul.mubr.f32.gmra.mrb[0].mxu0 %v135
  %v206 = vpop.f32.mrb[0].mxu0
  %v207 = vadd.f32 %v133, %v206
  %v208 = vpop.f32.mrb[0].mxu0
  %209 = vmatprep.mubr.f32.mxu0 0.0
  %210 = vmatmul.mubr.f32.gmra.mrb[0].mxu0 %v138
  %v211 = vpop.f32.mrb[0].mxu0
  %v212 = vadd.f32 %v133, %v211
  %v213 = vpop.f32.mrb[0].mxu0
  %214 = vdwg.mxu0
  %217 = vrot.lane.b32.xlu0 %v207, 120
  %v218 = vpop.permute.xlu0 %217
  %219 = vrot.lane.b32.xlu0 %v212, 120
  %v220 = vpop.permute.xlu0 %219
  %221 = vrot.lane.b32.xlu0 %v207, 112
  %v222 = vpop.permute.xlu0 %221
  %223 = vrot.lane.b32.xlu0 %v212, 112
  %v224 = vpop.permute.xlu0 %223
  %225 = vrot.lane.b32.xlu0 %v207, 104
  %v226 = vpop.permute.xlu0 %225
  %227 = vrot.lane.b32.xlu0 %v212, 104
  %v228 = vpop.permute.xlu0 %227
  %229 = vrot.lane.b32.xlu0 %v207, 96
  %v230 = vpop.permute.xlu0 %229
  %vm231 = vcmask 64512
  %v232 = vsel %vm231, %v207, 0
  %v234 = vsel %vm231, %v230, 0
  %236 = vmatprep.subr.mxu0 0.0
  %237 = vmatpush1.xpose.msra.mxu0 %v234
  %238 = vmatprep.subr.mxu0 0.0
  %239 = vmatpush1.xpose.msra.mxu0 0.0
  %240 = vmatprep.subr.mxu0 0.0
  %241 = vmatpush1.xpose.msra.mxu0 0.0
  %242 = vmatprep.subr.mxu0 0.0
  %243 = vmatpush1.xpose.msra.mxu0 0.0
  %244 = vmatprep.subr.mxu0 0.0
  %245 = vmatpush1.xpose.msra.mxu0 0.0
  %246 = vmatprep.subr.mxu0 0.0
  %247 = vmatpush1.xpose.msra.mxu0 0.0
  %248 = vmatprep.subr.mxu0 0.0
  %249 = vmatpush1.xpose.msra.mxu0 0.0
  %250 = vmatprep.subr.mxu0 0.0
  %251 = vmatpush1.xpose.msra.mxu0 0.0
  %252 = vmatprep.subr.mxu0 0.0
  %253 = vmatpush1.xpose.msra.mxu0 0.0
  %254 = vmatprep.subr.mxu0 0.0
  %255 = vmatpush1.xpose.msra.mxu0 0.0
  %256 = vmatprep.subr.mxu0 0.0
  %257 = vmatpush1.xpose.msra.mxu0 0.0
  %258 = vmatprep.subr.mxu0 0.0
  %259 = vmatpush1.xpose.msra.mxu0 0.0
  %260 = vmatprep.subr.mxu0 0.0
  %261 = vmatpush1.xpose.msra.mxu0 0.0
  %262 = vmatprep.subr.mxu0 0.0
  %263 = vmatpush1.xpose.msra.mxu0 0.0
  %264 = vmatprep.subr.mxu0 0.0
  %265 = vmatpush1.xpose.msra.mxu0 0.0
  %266 = vmatprep.subr.mxu0 0.0
  %267 = vmatpush1.xpose.msra.mxu0 0.0
  %268 = vmatprep.subr.mxu0 0.0
  %269 = vmatpush1.xpose.msra.mxu0 0.0
  %270 = vmatprep.subr.mxu0 0.0
  %271 = vmatpush1.xpose.msra.mxu0 0.0
  %272 = vmatprep.subr.mxu0 0.0
  %273 = vmatpush1.xpose.msra.mxu0 0.0
  %274 = vmatprep.subr.mxu0 0.0
  %275 = vmatpush1.xpose.msra.mxu0 0.0
  %276 = vmatprep.subr.mxu0 0.0
  %277 = vmatpush1.xpose.msra.mxu0 0.0
  %278 = vmatprep.subr.mxu0 0.0
  %279 = vmatpush1.xpose.msra.mxu0 0.0
  %280 = vmatprep.subr.mxu0 0.0
  %281 = vmatpush1.xpose.msra.mxu0 0.0
  %282 = vmatprep.subr.mxu0 0.0
  %283 = vmatpush1.xpose.msra.mxu0 0.0
  %284 = vmatprep.subr.mxu0 0.0
  %285 = vmatpush1.xpose.msra.mxu0 0.0
  %286 = vmatprep.subr.mxu0 0.0
  %287 = vmatpush1.xpose.msra.mxu0 0.0
  %288 = vmatprep.subr.mxu0 0.0
  %289 = vmatpush1.xpose.msra.mxu0 0.0
  %290 = vmatprep.subr.mxu0 0.0
  %291 = vmatpush1.xpose.msra.mxu0 0.0
  %292 = vmatprep.subr.mxu0 0.0
  %293 = vmatpush1.xpose.msra.mxu0 0.0
  %294 = vmatprep.subr.mxu0 0.0
  %295 = vmatpush1.xpose.msra.mxu0 0.0
  %296 = vmatprep.subr.mxu0 0.0
  %297 = vmatpush1.xpose.msra.mxu0 0.0
  %298 = vmatprep.subr.mxu0 0.0
  %299 = vmatpush1.xpose.msra.mxu0 0.0
  %300 = vmatprep.mubr.f32.mxu0 0.0
  %301 = vmatmul.mubr.f32.gmra.mrb[0].mxu0 %v232
  %v302 = vpop.f32.mrb[0].mxu0
  %v303 = vadd.f32 0.0, %v302
  %v304 = vpop.f32.mrb[0].mxu0
  %305 = vdwg.mxu0
  %306 = vrot.lane.b32.xlu0 %v212, 96
  %v307 = vpop.permute.xlu0 %306
  %v308 = vsel %vm231, %v212, 0
  %v310 = vsel %vm231, %v307, 0
  %312 = vmatprep.subr.mxu0 0.0
  %313 = vmatpush1.xpose.msra.mxu0 %v310
  %314 = vmatprep.subr.mxu0 0.0
  %315 = vmatpush1.xpose.msra.mxu0 0.0
  %316 = vmatprep.subr.mxu0 0.0
  %317 = vmatpush1.xpose.msra.mxu0 0.0
  %318 = vmatprep.subr.mxu0 0.0
  %319 = vmatpush1.xpose.msra.mxu0 0.0
  %320 = vmatprep.subr.mxu0 0.0
  %321 = vmatpush1.xpose.msra.mxu0 0.0
  %322 = vmatprep.subr.mxu0 0.0
  %323 = vmatpush1.xpose.msra.mxu0 0.0
  %324 = vmatprep.subr.mxu0 0.0
  %325 = vmatpush1.xpose.msra.mxu0 0.0
  %326 = vmatprep.subr.mxu0 0.0
  %327 = vmatpush1.xpose.msra.mxu0 0.0
  %328 = vmatprep.subr.mxu0 0.0
  %329 = vmatpush1.xpose.msra.mxu0 0.0
  %330 = vmatprep.subr.mxu0 0.0
  %331 = vmatpush1.xpose.msra.mxu0 0.0
  %332 = vmatprep.subr.mxu0 0.0
  %333 = vmatpush1.xpose.msra.mxu0 0.0
  %334 = vmatprep.subr.mxu0 0.0
  %335 = vmatpush1.xpose.msra.mxu0 0.0
  %336 = vmatprep.subr.mxu0 0.0
  %337 = vmatpush1.xpose.msra.mxu0 0.0
  %338 = vmatprep.subr.mxu0 0.0
  %339 = vmatpush1.xpose.msra.mxu0 0.0
  %340 = vmatprep.subr.mxu0 0.0
  %341 = vmatpush1.xpose.msra.mxu0 0.0
  %342 = vmatprep.subr.mxu0 0.0
  %343 = vmatpush1.xpose.msra.mxu0 0.0
  %344 = vmatprep.subr.mxu0 0.0
  %345 = vmatpush1.xpose.msra.mxu0 0.0
  %346 = vmatprep.subr.mxu0 0.0
  %347 = vmatpush1.xpose.msra.mxu0 0.0
  %348 = vmatprep.subr.mxu0 0.0
  %349 = vmatpush1.xpose.msra.mxu0 0.0
  %350 = vmatprep.subr.mxu0 0.0
  %351 = vmatpush1.xpose.msra.mxu0 0.0
  %352 = vmatprep.subr.mxu0 0.0
  %353 = vmatpush1.xpose.msra.mxu0 0.0
  %354 = vmatprep.subr.mxu0 0.0
  %355 = vmatpush1.xpose.msra.mxu0 0.0
  %356 = vmatprep.subr.mxu0 0.0
  %357 = vmatpush1.xpose.msra.mxu0 0.0
  %358 = vmatprep.subr.mxu0 0.0
  %359 = vmatpush1.xpose.msra.mxu0 0.0
  %360 = vmatprep.subr.mxu0 0.0
  %361 = vmatpush1.xpose.msra.mxu0 0.0
  %362 = vmatprep.subr.mxu0 0.0
  %363 = vmatpush1.xpose.msra.mxu0 0.0
  %364 = vmatprep.subr.mxu0 0.0
  %365 = vmatpush1.xpose.msra.mxu0 0.0
  %366 = vmatprep.subr.mxu0 0.0
  %367 = vmatpush1.xpose.msra.mxu0 0.0
  %368 = vmatprep.subr.mxu0 0.0
  %369 = vmatpush1.xpose.msra.mxu0 0.0
  %370 = vmatprep.subr.mxu0 0.0
  %371 = vmatpush1.xpose.msra.mxu0 0.0
  %372 = vmatprep.subr.mxu0 0.0
  %373 = vmatpush1.xpose.msra.mxu0 0.0
  %374 = vmatprep.subr.mxu0 0.0
  %375 = vmatpush1.xpose.msra.mxu0 0.0
  %376 = vmatprep.mubr.f32.mxu0 0.0
  %377 = vmatmul.mubr.f32.gmra.mrb[0].mxu0 %v308
  %v378 = vpop.f32.mrb[0].mxu0
  %v379 = vadd.f32 0.0, %v378
  %v380 = vpop.f32.mrb[0].mxu0
  %381 = vdwg.mxu0
  %382 = vrot.lane.b32.xlu0 %v218, 96
  %v383 = vpop.permute.xlu0 %382
  %v384 = vsel %vm231, %v218, 0
  %v386 = vsel %vm231, %v383, 0
  %388 = vmatprep.subr.mxu0 0.0
  %389 = vmatpush1.xpose.msra.mxu0 %v386
  %390 = vmatprep.subr.mxu0 0.0
  %391 = vmatpush1.xpose.msra.mxu0 0.0
  %392 = vmatprep.subr.mxu0 0.0
  %393 = vmatpush1.xpose.msra.mxu0 0.0
  %394 = vmatprep.subr.mxu0 0.0
  %395 = vmatpush1.xpose.msra.mxu0 0.0
  %396 = vmatprep.subr.mxu0 0.0
  %397 = vmatpush1.xpose.msra.mxu0 0.0
  %398 = vmatprep.subr.mxu0 0.0
  %399 = vmatpush1.xpose.msra.mxu0 0.0
  %400 = vmatprep.subr.mxu0 0.0
  %401 = vmatpush1.xpose.msra.mxu0 0.0
  %402 = vmatprep.subr.mxu0 0.0
  %403 = vmatpush1.xpose.msra.mxu0 0.0
  %404 = vmatprep.subr.mxu0 0.0
  %405 = vmatpush1.xpose.msra.mxu0 0.0
  %406 = vmatprep.subr.mxu0 0.0
  %407 = vmatpush1.xpose.msra.mxu0 0.0
  %408 = vmatprep.subr.mxu0 0.0
  %409 = vmatpush1.xpose.msra.mxu0 0.0
  %410 = vmatprep.subr.mxu0 0.0
  %411 = vmatpush1.xpose.msra.mxu0 0.0
  %412 = vmatprep.subr.mxu0 0.0
  %413 = vmatpush1.xpose.msra.mxu0 0.0
  %414 = vmatprep.subr.mxu0 0.0
  %415 = vmatpush1.xpose.msra.mxu0 0.0
  %416 = vmatprep.subr.mxu0 0.0
  %417 = vmatpush1.xpose.msra.mxu0 0.0
  %418 = vmatprep.subr.mxu0 0.0
  %419 = vmatpush1.xpose.msra.mxu0 0.0
  %420 = vmatprep.subr.mxu0 0.0
  %421 = vmatpush1.xpose.msra.mxu0 0.0
  %422 = vmatprep.subr.mxu0 0.0
  %423 = vmatpush1.xpose.msra.mxu0 0.0
  %424 = vmatprep.subr.mxu0 0.0
  %425 = vmatpush1.xpose.msra.mxu0 0.0
  %426 = vmatprep.subr.mxu0 0.0
  %427 = vmatpush1.xpose.msra.mxu0 0.0
  %428 = vmatprep.subr.mxu0 0.0
  %429 = vmatpush1.xpose.msra.mxu0 0.0
  %430 = vmatprep.subr.mxu0 0.0
  %431 = vmatpush1.xpose.msra.mxu0 0.0
  %432 = vmatprep.subr.mxu0 0.0
  %433 = vmatpush1.xpose.msra.mxu0 0.0
  %434 = vmatprep.subr.mxu0 0.0
  %435 = vmatpush1.xpose.msra.mxu0 0.0
  %436 = vmatprep.subr.mxu0 0.0
  %437 = vmatpush1.xpose.msra.mxu0 0.0
  %438 = vmatprep.subr.mxu0 0.0
  %439 = vmatpush1.xpose.msra.mxu0 0.0
  %440 = vmatprep.subr.mxu0 0.0
  %441 = vmatpush1.xpose.msra.mxu0 0.0
  %442 = vmatprep.subr.mxu0 0.0
  %443 = vmatpush1.xpose.msra.mxu0 0.0
  %444 = vmatprep.subr.mxu0 0.0
  %445 = vmatpush1.xpose.msra.mxu0 0.0
  %446 = vmatprep.subr.mxu0 0.0
  %447 = vmatpush1.xpose.msra.mxu0 0.0
  %448 = vmatprep.subr.mxu0 0.0
  %449 = vmatpush1.xpose.msra.mxu0 0.0
  %450 = vmatprep.subr.mxu0 0.0
  %451 = vmatpush1.xpose.msra.mxu0 0.0
  %452 = vmatprep.mubr.f32.mxu0 0.0
  %453 = vmatmul.mubr.f32.gmra.mrb[0].mxu0 %v384
  %v454 = vpop.f32.mrb[0].mxu0
  %v455 = vadd.f32 0.0, %v454
  %v456 = vpop.f32.mrb[0].mxu0
  %457 = vdwg.mxu0
  %458 = vrot.lane.b32.xlu0 %v220, 96
  %v459 = vpop.permute.xlu0 %458
  %v460 = vsel %vm231, %v220, 0
  %v462 = vsel %vm231, %v459, 0
  %464 = vmatprep.subr.mxu0 0.0
  %465 = vmatpush1.xpose.msra.mxu0 %v462
  %466 = vmatprep.subr.mxu0 0.0
  %467 = vmatpush1.xpose.msra.mxu0 0.0
  %468 = vmatprep.subr.mxu0 0.0
  %469 = vmatpush1.xpose.msra.mxu0 0.0
  %470 = vmatprep.subr.mxu0 0.0
  %471 = vmatpush1.xpose.msra.mxu0 0.0
  %472 = vmatprep.subr.mxu0 0.0
  %473 = vmatpush1.xpose.msra.mxu0 0.0
  %474 = vmatprep.subr.mxu0 0.0
  %475 = vmatpush1.xpose.msra.mxu0 0.0
  %476 = vmatprep.subr.mxu0 0.0
  %477 = vmatpush1.xpose.msra.mxu0 0.0
  %478 = vmatprep.subr.mxu0 0.0
  %479 = vmatpush1.xpose.msra.mxu0 0.0
  %480 = vmatprep.subr.mxu0 0.0
  %481 = vmatpush1.xpose.msra.mxu0 0.0
  %482 = vmatprep.subr.mxu0 0.0
  %483 = vmatpush1.xpose.msra.mxu0 0.0
  %484 = vmatprep.subr.mxu0 0.0
  %485 = vmatpush1.xpose.msra.mxu0 0.0
  %486 = vmatprep.subr.mxu0 0.0
  %487 = vmatpush1.xpose.msra.mxu0 0.0
  %488 = vmatprep.subr.mxu0 0.0
  %489 = vmatpush1.xpose.msra.mxu0 0.0
  %490 = vmatprep.subr.mxu0 0.0
  %491 = vmatpush1.xpose.msra.mxu0 0.0
  %492 = vmatprep.subr.mxu0 0.0
  %493 = vmatpush1.xpose.msra.mxu0 0.0
  %494 = vmatprep.subr.mxu0 0.0
  %495 = vmatpush1.xpose.msra.mxu0 0.0
  %496 = vmatprep.subr.mxu0 0.0
  %497 = vmatpush1.xpose.msra.mxu0 0.0
  %498 = vmatprep.subr.mxu0 0.0
  %499 = vmatpush1.xpose.msra.mxu0 0.0
  %500 = vmatprep.subr.mxu0 0.0
  %501 = vmatpush1.xpose.msra.mxu0 0.0
  %502 = vmatprep.subr.mxu0 0.0
  %503 = vmatpush1.xpose.msra.mxu0 0.0
  %504 = vmatprep.subr.mxu0 0.0
  %505 = vmatpush1.xpose.msra.mxu0 0.0
  %506 = vmatprep.subr.mxu0 0.0
  %507 = vmatpush1.xpose.msra.mxu0 0.0
  %508 = vmatprep.subr.mxu0 0.0
  %509 = vmatpush1.xpose.msra.mxu0 0.0
  %510 = vmatprep.subr.mxu0 0.0
  %511 = vmatpush1.xpose.msra.mxu0 0.0
  %512 = vmatprep.subr.mxu0 0.0
  %513 = vmatpush1.xpose.msra.mxu0 0.0
  %514 = vmatprep.subr.mxu0 0.0
  %515 = vmatpush1.xpose.msra.mxu0 0.0
  %516 = vmatprep.subr.mxu0 0.0
  %517 = vmatpush1.xpose.msra.mxu0 0.0
  %518 = vmatprep.subr.mxu0 0.0
  %519 = vmatpush1.xpose.msra.mxu0 0.0
  %520 = vmatprep.subr.mxu0 0.0
  %521 = vmatpush1.xpose.msra.mxu0 0.0
  %522 = vmatprep.subr.mxu0 0.0
  %523 = vmatpush1.xpose.msra.mxu0 0.0
  %524 = vmatprep.subr.mxu0 0.0
  %525 = vmatpush1.xpose.msra.mxu0 0.0
  %526 = vmatprep.subr.mxu0 0.0
  %527 = vmatpush1.xpose.msra.mxu0 0.0
  %528 = vmatprep.mubr.f32.mxu0 0.0
  %529 = vmatmul.mubr.f32.gmra.mrb[0].mxu0 %v460
  %v530 = vpop.f32.mrb[0].mxu0
  %v531 = vadd.f32 0.0, %v530
  %v532 = vpop.f32.mrb[0].mxu0
  %533 = vdwg.mxu0
  %534 = vrot.lane.b32.xlu0 %v222, 96
  %v535 = vpop.permute.xlu0 %534
  %v536 = vsel %vm231, %v222, 0
  %v538 = vsel %vm231, %v535, 0
  %540 = vmatprep.subr.mxu0 0.0
  %541 = vmatpush1.xpose.msra.mxu0 %v538
  %542 = vmatprep.subr.mxu0 0.0
  %543 = vmatpush1.xpose.msra.mxu0 0.0
  %544 = vmatprep.subr.mxu0 0.0
  %545 = vmatpush1.xpose.msra.mxu0 0.0
  %546 = vmatprep.subr.mxu0 0.0
  %547 = vmatpush1.xpose.msra.mxu0 0.0
  %548 = vmatprep.subr.mxu0 0.0
  %549 = vmatpush1.xpose.msra.mxu0 0.0
  %550 = vmatprep.subr.mxu0 0.0
  %551 = vmatpush1.xpose.msra.mxu0 0.0
  %552 = vmatprep.subr.mxu0 0.0
  %553 = vmatpush1.xpose.msra.mxu0 0.0
  %554 = vmatprep.subr.mxu0 0.0
  %555 = vmatpush1.xpose.msra.mxu0 0.0
  %556 = vmatprep.subr.mxu0 0.0
  %557 = vmatpush1.xpose.msra.mxu0 0.0
  %558 = vmatprep.subr.mxu0 0.0
  %559 = vmatpush1.xpose.msra.mxu0 0.0
  %560 = vmatprep.subr.mxu0 0.0
  %561 = vmatpush1.xpose.msra.mxu0 0.0
  %562 = vmatprep.subr.mxu0 0.0
  %563 = vmatpush1.xpose.msra.mxu0 0.0
  %564 = vmatprep.subr.mxu0 0.0
  %565 = vmatpush1.xpose.msra.mxu0 0.0
  %566 = vmatprep.subr.mxu0 0.0
  %567 = vmatpush1.xpose.msra.mxu0 0.0
  %568 = vmatprep.subr.mxu0 0.0
  %569 = vmatpush1.xpose.msra.mxu0 0.0
  %570 = vmatprep.subr.mxu0 0.0
  %571 = vmatpush1.xpose.msra.mxu0 0.0
  %572 = vmatprep.subr.mxu0 0.0
  %573 = vmatpush1.xpose.msra.mxu0 0.0
  %574 = vmatprep.subr.mxu0 0.0
  %575 = vmatpush1.xpose.msra.mxu0 0.0
  %576 = vmatprep.subr.mxu0 0.0
  %577 = vmatpush1.xpose.msra.mxu0 0.0
  %578 = vmatprep.subr.mxu0 0.0
  %579 = vmatpush1.xpose.msra.mxu0 0.0
  %580 = vmatprep.subr.mxu0 0.0
  %581 = vmatpush1.xpose.msra.mxu0 0.0
  %582 = vmatprep.subr.mxu0 0.0
  %583 = vmatpush1.xpose.msra.mxu0 0.0
  %584 = vmatprep.subr.mxu0 0.0
  %585 = vmatpush1.xpose.msra.mxu0 0.0
  %586 = vmatprep.subr.mxu0 0.0
  %587 = vmatpush1.xpose.msra.mxu0 0.0
  %588 = vmatprep.subr.mxu0 0.0
  %589 = vmatpush1.xpose.msra.mxu0 0.0
  %590 = vmatprep.subr.mxu0 0.0
  %591 = vmatpush1.xpose.msra.mxu0 0.0
  %592 = vmatprep.subr.mxu0 0.0
  %593 = vmatpush1.xpose.msra.mxu0 0.0
  %594 = vmatprep.subr.mxu0 0.0
  %595 = vmatpush1.xpose.msra.mxu0 0.0
  %596 = vmatprep.subr.mxu0 0.0
  %597 = vmatpush1.xpose.msra.mxu0 0.0
  %598 = vmatprep.subr.mxu0 0.0
  %599 = vmatpush1.xpose.msra.mxu0 0.0
  %600 = vmatprep.subr.mxu0 0.0
  %601 = vmatpush1.xpose.msra.mxu0 0.0
  %602 = vmatprep.subr.mxu0 0.0
  %603 = vmatpush1.xpose.msra.mxu0 0.0
  %604 = vmatprep.mubr.f32.mxu0 0.0
  %605 = vmatmul.mubr.f32.gmra.mrb[0].mxu0 %v536
  %v606 = vpop.f32.mrb[0].mxu0
  %v607 = vadd.f32 0.0, %v606
  %v608 = vpop.f32.mrb[0].mxu0
  %609 = vdwg.mxu0
  %610 = vrot.lane.b32.xlu0 %v224, 96
  %v611 = vpop.permute.xlu0 %610
  %v612 = vsel %vm231, %v224, 0
  %v614 = vsel %vm231, %v611, 0
  %616 = vmatprep.subr.mxu0 0.0
  %617 = vmatpush1.xpose.msra.mxu0 %v614
  %618 = vmatprep.subr.mxu0 0.0
  %619 = vmatpush1.xpose.msra.mxu0 0.0
  %620 = vmatprep.subr.mxu0 0.0
  %621 = vmatpush1.xpose.msra.mxu0 0.0
  %622 = vmatprep.subr.mxu0 0.0
  %623 = vmatpush1.xpose.msra.mxu0 0.0
  %624 = vmatprep.subr.mxu0 0.0
  %625 = vmatpush1.xpose.msra.mxu0 0.0
  %626 = vmatprep.subr.mxu0 0.0
  %627 = vmatpush1.xpose.msra.mxu0 0.0
  %628 = vmatprep.subr.mxu0 0.0
  %629 = vmatpush1.xpose.msra.mxu0 0.0
  %630 = vmatprep.subr.mxu0 0.0
  %631 = vmatpush1.xpose.msra.mxu0 0.0
  %632 = vmatprep.subr.mxu0 0.0
  %633 = vmatpush1.xpose.msra.mxu0 0.0
  %634 = vmatprep.subr.mxu0 0.0
  %635 = vmatpush1.xpose.msra.mxu0 0.0
  %636 = vmatprep.subr.mxu0 0.0
  %637 = vmatpush1.xpose.msra.mxu0 0.0
  %638 = vmatprep.subr.mxu0 0.0
  %639 = vmatpush1.xpose.msra.mxu0 0.0
  %640 = vmatprep.subr.mxu0 0.0
  %641 = vmatpush1.xpose.msra.mxu0 0.0
  %642 = vmatprep.subr.mxu0 0.0
  %643 = vmatpush1.xpose.msra.mxu0 0.0
  %644 = vmatprep.subr.mxu0 0.0
  %645 = vmatpush1.xpose.msra.mxu0 0.0
  %646 = vmatprep.subr.mxu0 0.0
  %647 = vmatpush1.xpose.msra.mxu0 0.0
  %648 = vmatprep.subr.mxu0 0.0
  %649 = vmatpush1.xpose.msra.mxu0 0.0
  %650 = vmatprep.subr.mxu0 0.0
  %651 = vmatpush1.xpose.msra.mxu0 0.0
  %652 = vmatprep.subr.mxu0 0.0
  %653 = vmatpush1.xpose.msra.mxu0 0.0
  %654 = vmatprep.subr.mxu0 0.0
  %655 = vmatpush1.xpose.msra.mxu0 0.0
  %656 = vmatprep.subr.mxu0 0.0
  %657 = vmatpush1.xpose.msra.mxu0 0.0
  %658 = vmatprep.subr.mxu0 0.0
  %659 = vmatpush1.xpose.msra.mxu0 0.0
  %660 = vmatprep.subr.mxu0 0.0
  %661 = vmatpush1.xpose.msra.mxu0 0.0
  %662 = vmatprep.subr.mxu0 0.0
  %663 = vmatpush1.xpose.msra.mxu0 0.0
  %664 = vmatprep.subr.mxu0 0.0
  %665 = vmatpush1.xpose.msra.mxu0 0.0
  %666 = vmatprep.subr.mxu0 0.0
  %667 = vmatpush1.xpose.msra.mxu0 0.0
  %668 = vmatprep.subr.mxu0 0.0
  %669 = vmatpush1.xpose.msra.mxu0 0.0
  %670 = vmatprep.subr.mxu0 0.0
  %671 = vmatpush1.xpose.msra.mxu0 0.0
  %672 = vmatprep.subr.mxu0 0.0
  %673 = vmatpush1.xpose.msra.mxu0 0.0
  %674 = vmatprep.subr.mxu0 0.0
  %675 = vmatpush1.xpose.msra.mxu0 0.0
  %676 = vmatprep.subr.mxu0 0.0
  %677 = vmatpush1.xpose.msra.mxu0 0.0
  %678 = vmatprep.subr.mxu0 0.0
  %679 = vmatpush1.xpose.msra.mxu0 0.0
  %680 = vmatprep.mubr.f32.mxu0 0.0
  %681 = vmatmul.mubr.f32.gmra.mrb[0].mxu0 %v612
  %v682 = vpop.f32.mrb[0].mxu0
  %v683 = vadd.f32 0.0, %v682
  %v684 = vpop.f32.mrb[0].mxu0
  %685 = vdwg.mxu0
  %686 = vrot.lane.b32.xlu0 %v226, 96
  %v687 = vpop.permute.xlu0 %686
  %v688 = vsel %vm231, %v226, 0
  %v690 = vsel %vm231, %v687, 0
  %692 = vmatprep.subr.mxu0 0.0
  %693 = vmatpush1.xpose.msra.mxu0 %v690
  %694 = vmatprep.subr.mxu0 0.0
  %695 = vmatpush1.xpose.msra.mxu0 0.0
  %696 = vmatprep.subr.mxu0 0.0
  %697 = vmatpush1.xpose.msra.mxu0 0.0
  %698 = vmatprep.subr.mxu0 0.0
  %699 = vmatpush1.xpose.msra.mxu0 0.0
  %700 = vmatprep.subr.mxu0 0.0
  %701 = vmatpush1.xpose.msra.mxu0 0.0
  %702 = vmatprep.subr.mxu0 0.0
  %703 = vmatpush1.xpose.msra.mxu0 0.0
  %704 = vmatprep.subr.mxu0 0.0
  %705 = vmatpush1.xpose.msra.mxu0 0.0
  %706 = vmatprep.subr.mxu0 0.0
  %707 = vmatpush1.xpose.msra.mxu0 0.0
  %708 = vmatprep.subr.mxu0 0.0
  %709 = vmatpush1.xpose.msra.mxu0 0.0
  %710 = vmatprep.subr.mxu0 0.0
  %711 = vmatpush1.xpose.msra.mxu0 0.0
  %712 = vmatprep.subr.mxu0 0.0
  %713 = vmatpush1.xpose.msra.mxu0 0.0
  %714 = vmatprep.subr.mxu0 0.0
  %715 = vmatpush1.xpose.msra.mxu0 0.0
  %716 = vmatprep.subr.mxu0 0.0
  %717 = vmatpush1.xpose.msra.mxu0 0.0
  %718 = vmatprep.subr.mxu0 0.0
  %719 = vmatpush1.xpose.msra.mxu0 0.0
  %720 = vmatprep.subr.mxu0 0.0
  %721 = vmatpush1.xpose.msra.mxu0 0.0
  %722 = vmatprep.subr.mxu0 0.0
  %723 = vmatpush1.xpose.msra.mxu0 0.0
  %724 = vmatprep.subr.mxu0 0.0
  %725 = vmatpush1.xpose.msra.mxu0 0.0
  %726 = vmatprep.subr.mxu0 0.0
  %727 = vmatpush1.xpose.msra.mxu0 0.0
  %728 = vmatprep.subr.mxu0 0.0
  %729 = vmatpush1.xpose.msra.mxu0 0.0
  %730 = vmatprep.subr.mxu0 0.0
  %731 = vmatpush1.xpose.msra.mxu0 0.0
  %732 = vmatprep.subr.mxu0 0.0
  %733 = vmatpush1.xpose.msra.mxu0 0.0
  %734 = vmatprep.subr.mxu0 0.0
  %735 = vmatpush1.xpose.msra.mxu0 0.0
  %736 = vmatprep.subr.mxu0 0.0
  %737 = vmatpush1.xpose.msra.mxu0 0.0
  %738 = vmatprep.subr.mxu0 0.0
  %739 = vmatpush1.xpose.msra.mxu0 0.0
  %740 = vmatprep.subr.mxu0 0.0
  %741 = vmatpush1.xpose.msra.mxu0 0.0
  %742 = vmatprep.subr.mxu0 0.0
  %743 = vmatpush1.xpose.msra.mxu0 0.0
  %744 = vmatprep.subr.mxu0 0.0
  %745 = vmatpush1.xpose.msra.mxu0 0.0
  %746 = vmatprep.subr.mxu0 0.0
  %747 = vmatpush1.xpose.msra.mxu0 0.0
  %748 = vmatprep.subr.mxu0 0.0
  %749 = vmatpush1.xpose.msra.mxu0 0.0
  %750 = vmatprep.subr.mxu0 0.0
  %751 = vmatpush1.xpose.msra.mxu0 0.0
  %752 = vmatprep.subr.mxu0 0.0
  %753 = vmatpush1.xpose.msra.mxu0 0.0
  %754 = vmatprep.subr.mxu0 0.0
  %755 = vmatpush1.xpose.msra.mxu0 0.0
  %756 = vmatprep.mubr.f32.mxu0 0.0
  %757 = vmatmul.mubr.f32.gmra.mrb[0].mxu0 %v688
  %v758 = vpop.f32.mrb[0].mxu0
  %v759 = vadd.f32 0.0, %v758
  %v760 = vpop.f32.mrb[0].mxu0
  %761 = vdwg.mxu0
  %762 = vrot.lane.b32.xlu0 %v228, 96
  %v763 = vpop.permute.xlu0 %762
  %v764 = vsel %vm231, %v228, 0
  %v766 = vsel %vm231, %v763, 0
  %768 = vmatprep.subr.mxu0 0.0
  %769 = vmatpush1.xpose.msra.mxu0 %v766
  %770 = vmatprep.subr.mxu0 0.0
  %771 = vmatpush1.xpose.msra.mxu0 0.0
  %772 = vmatprep.subr.mxu0 0.0
  %773 = vmatpush1.xpose.msra.mxu0 0.0
  %774 = vmatprep.subr.mxu0 0.0
  %775 = vmatpush1.xpose.msra.mxu0 0.0
  %776 = vmatprep.subr.mxu0 0.0
  %777 = vmatpush1.xpose.msra.mxu0 0.0
  %778 = vmatprep.subr.mxu0 0.0
  %779 = vmatpush1.xpose.msra.mxu0 0.0
  %780 = vmatprep.subr.mxu0 0.0
  %781 = vmatpush1.xpose.msra.mxu0 0.0
  %782 = vmatprep.subr.mxu0 0.0
  %783 = vmatpush1.xpose.msra.mxu0 0.0
  %784 = vmatprep.subr.mxu0 0.0
  %785 = vmatpush1.xpose.msra.mxu0 0.0
  %786 = vmatprep.subr.mxu0 0.0
  %787 = vmatpush1.xpose.msra.mxu0 0.0
  %788 = vmatprep.subr.mxu0 0.0
  %789 = vmatpush1.xpose.msra.mxu0 0.0
  %790 = vmatprep.subr.mxu0 0.0
  %791 = vmatpush1.xpose.msra.mxu0 0.0
  %792 = vmatprep.subr.mxu0 0.0
  %793 = vmatpush1.xpose.msra.mxu0 0.0
  %794 = vmatprep.subr.mxu0 0.0
  %795 = vmatpush1.xpose.msra.mxu0 0.0
  %796 = vmatprep.subr.mxu0 0.0
  %797 = vmatpush1.xpose.msra.mxu0 0.0
  %798 = vmatprep.subr.mxu0 0.0
  %799 = vmatpush1.xpose.msra.mxu0 0.0
  %800 = vmatprep.subr.mxu0 0.0
  %801 = vmatpush1.xpose.msra.mxu0 0.0
  %802 = vmatprep.subr.mxu0 0.0
  %803 = vmatpush1.xpose.msra.mxu0 0.0
  %804 = vmatprep.subr.mxu0 0.0
  %805 = vmatpush1.xpose.msra.mxu0 0.0
  %806 = vmatprep.subr.mxu0 0.0
  %807 = vmatpush1.xpose.msra.mxu0 0.0
  %808 = vmatprep.subr.mxu0 0.0
  %809 = vmatpush1.xpose.msra.mxu0 0.0
  %810 = vmatprep.subr.mxu0 0.0
  %811 = vmatpush1.xpose.msra.mxu0 0.0
  %812 = vmatprep.subr.mxu0 0.0
  %813 = vmatpush1.xpose.msra.mxu0 0.0
  %814 = vmatprep.subr.mxu0 0.0
  %815 = vmatpush1.xpose.msra.mxu0 0.0
  %816 = vmatprep.subr.mxu0 0.0
  %817 = vmatpush1.xpose.msra.mxu0 0.0
  %818 = vmatprep.subr.mxu0 0.0
  %819 = vmatpush1.xpose.msra.mxu0 0.0
  %820 = vmatprep.subr.mxu0 0.0
  %821 = vmatpush1.xpose.msra.mxu0 0.0
  %822 = vmatprep.subr.mxu0 0.0
  %823 = vmatpush1.xpose.msra.mxu0 0.0
  %824 = vmatprep.subr.mxu0 0.0
  %825 = vmatpush1.xpose.msra.mxu0 0.0
  %826 = vmatprep.subr.mxu0 0.0
  %827 = vmatpush1.xpose.msra.mxu0 0.0
  %828 = vmatprep.subr.mxu0 0.0
  %829 = vmatpush1.xpose.msra.mxu0 0.0
  %830 = vmatprep.subr.mxu0 0.0
  %831 = vmatpush1.xpose.msra.mxu0 0.0
  %832 = vmatprep.mubr.f32.mxu0 0.0
  %833 = vmatmul.mubr.f32.gmra.mrb[0].mxu0 %v764
  %v834 = vpop.f32.mrb[0].mxu0
  %v835 = vadd.f32 0.0, %v834
  %v836 = vpop.f32.mrb[0].mxu0
  %837 = vdwg.mxu0
  %v838 = vmul.f32 %v303, 0.35355338
  %v839 = vmul.f32 %v379, 0.35355338
  %v840 = vmul.f32 %v455, 0.35355338
  %v841 = vmul.f32 %v531, 0.35355338
  %v842 = vmul.f32 %v607, 0.35355338
  %v843 = vmul.f32 %v683, 0.35355338
  %v844 = vmul.f32 %v759, 0.35355338
  %v845 = vmul.f32 %v835, 0.35355338
  %v846 = vsel %vm231, %v838, -inf
  %847 = vmax.xlane.f32.xlu0 %v846
  %v848 = vpop.xlane.xlu0 %847
  %v849 = vsel %vm231, %v839, -inf
  %850 = vmax.xlane.f32.xlu0 %v849
  %v851 = vpop.xlane.xlu0 %850
  %v852 = vsel %vm231, %v840, -inf
  %853 = vmax.xlane.f32.xlu0 %v852
  %v854 = vpop.xlane.xlu0 %853
  %v855 = vsel %vm231, %v841, -inf
  %856 = vmax.xlane.f32.xlu0 %v855
  %v857 = vpop.xlane.xlu0 %856
  %v858 = vsel %vm231, %v842, -inf
  %859 = vmax.xlane.f32.xlu0 %v858
  %v860 = vpop.xlane.xlu0 %859
  %v861 = vsel %vm231, %v843, -inf
  %862 = vmax.xlane.f32.xlu0 %v861
  %v863 = vpop.xlane.xlu0 %862
  %v864 = vsel %vm231, %v844, -inf
  %865 = vmax.xlane.f32.xlu0 %v864
  %v866 = vpop.xlane.xlu0 %865
  %v867 = vsel %vm231, %v845, -inf
  %868 = vmax.xlane.f32.xlu0 %v867
  %v869 = vpop.xlane.xlu0 %868
  %v870 = vsub.f32 %v838, %v848
  %v871 = vsub.f32 %v839, %v851
  %v872 = vsub.f32 %v840, %v854
  %v873 = vsub.f32 %v841, %v857
  %v874 = vsub.f32 %v842, %v860
  %v875 = vsub.f32 %v843, %v863
  %v876 = vsub.f32 %v844, %v866
  %v877 = vsub.f32 %v845, %v869
  %v878 = vmul.f32 %v870, 1.442695
  %v879 = vpow.pop %v878
  %v880 = vmul.f32 %v871, 1.442695
  %v881 = vpow.pop %v880
  %v882 = vmul.f32 %v872, 1.442695
  %v883 = vpow.pop %v882
  %v884 = vmul.f32 %v873, 1.442695
  %v885 = vpow.pop %v884
  %v886 = vmul.f32 %v874, 1.442695
  %v887 = vpow.pop %v886
  %v888 = vmul.f32 %v875, 1.442695
  %v889 = vpow.pop %v888
  %v890 = vmul.f32 %v876, 1.442695
  %v891 = vpow.pop %v890
  %v892 = vmul.f32 %v877, 1.442695
  %v893 = vpow.pop %v892
  %v894 = vsel %vm231, %v879, 0.0
  %895 = vadd.xlane.f32.xlu0 %v894
  %v896 = vpop.xlane.xlu0 %895
  %v897 = vsel %vm231, %v881, 0.0
  %898 = vadd.xlane.f32.xlu0 %v897
  %v899 = vpop.xlane.xlu0 %898
  %v900 = vsel %vm231, %v883, 0.0
  %901 = vadd.xlane.f32.xlu0 %v900
  %v902 = vpop.xlane.xlu0 %901
  %v903 = vsel %vm231, %v885, 0.0
  %904 = vadd.xlane.f32.xlu0 %v903
  %v905 = vpop.xlane.xlu0 %904
  %v906 = vsel %vm231, %v887, 0.0
  %907 = vadd.xlane.f32.xlu0 %v906
  %v908 = vpop.xlane.xlu0 %907
  %v909 = vsel %vm231, %v889, 0.0
  %910 = vadd.xlane.f32.xlu0 %v909
  %v911 = vpop.xlane.xlu0 %910
  %v912 = vsel %vm231, %v891, 0.0
  %913 = vadd.xlane.f32.xlu0 %v912
  %v914 = vpop.xlane.xlu0 %913
  %v915 = vsel %vm231, %v893, 0.0
  %916 = vadd.xlane.f32.xlu0 %v915
  %v917 = vpop.xlane.xlu0 %916
  %v918 = vrcp.pop %v896
  %v919 = vrcp.pop %v899
  %v920 = vrcp.pop %v902
  %v921 = vrcp.pop %v905
  %v922 = vrcp.pop %v908
  %v923 = vrcp.pop %v911
  %v924 = vrcp.pop %v914
  %v925 = vrcp.pop %v917
  %v926 = vmul.f32 %v879, %v918
  %v927 = vmul.f32 %v881, %v919
  %v928 = vmul.f32 %v883, %v920
  %v929 = vmul.f32 %v885, %v921
  %v930 = vmul.f32 %v887, %v922
  %v931 = vmul.f32 %v889, %v923
  %v932 = vmul.f32 %v891, %v924
  %v933 = vmul.f32 %v893, %v925
  %v934 = vsel %vm231, %v926, 0.0
  %v935 = vsel %vm231, %v928, 0.0
  %v936 = vadd.f32 %v934, %v935
  %v937 = vsel %vm231, %v930, 0.0
  %v938 = vadd.f32 %v936, %v937
  %v939 = vsel %vm231, %v932, 0.0
  %v940 = vadd.f32 %v938, %v939
  %v941 = vsel %vm231, %v927, 0.0
  %v942 = vsel %vm231, %v929, 0.0
  %v943 = vadd.f32 %v941, %v942
  %v944 = vsel %vm231, %v931, 0.0
  %v945 = vadd.f32 %v943, %v944
  %v946 = vsel %vm231, %v933, 0.0
  %v947 = vadd.f32 %v945, %v946
  %v948 = vrcp.pop 4.0
  %v949 = vmul.f32 %v940, %v948
  %v950 = vmul.f32 %v947, %v948
  %951 = vrot.lane.b32.xlu0 %v207, 64
  %v952 = vpop.permute.xlu0 %951
  %v955 = vsel %vm231, %v926, 0
  %957 = vmatprep.subr.mxu0 0.0
  %958 = vmatpush1.msra.mxu0 %v952
  %959 = vmatprep.subr.mxu0 0.0
  %960 = vmatpush1.msra.mxu0 0.0
  %961 = vmatprep.subr.mxu0 0.0
  %962 = vmatpush1.msra.mxu0 0.0
  %963 = vmatprep.subr.mxu0 0.0
  %964 = vmatpush1.msra.mxu0 0.0
  %965 = vmatprep.subr.mxu0 0.0
  %966 = vmatpush1.msra.mxu0 0.0
  %967 = vmatprep.subr.mxu0 0.0
  %968 = vmatpush1.msra.mxu0 0.0
  %969 = vmatprep.subr.mxu0 0.0
  %970 = vmatpush1.msra.mxu0 0.0
  %971 = vmatprep.subr.mxu0 0.0
  %972 = vmatpush1.msra.mxu0 0.0
  %973 = vmatprep.subr.mxu0 0.0
  %974 = vmatpush1.msra.mxu0 0.0
  %975 = vmatprep.subr.mxu0 0.0
  %976 = vmatpush1.msra.mxu0 0.0
  %977 = vmatprep.subr.mxu0 0.0
  %978 = vmatpush1.msra.mxu0 0.0
  %979 = vmatprep.subr.mxu0 0.0
  %980 = vmatpush1.msra.mxu0 0.0
  %981 = vmatprep.subr.mxu0 0.0
  %982 = vmatpush1.msra.mxu0 0.0
  %983 = vmatprep.subr.mxu0 0.0
  %984 = vmatpush1.msra.mxu0 0.0
  %985 = vmatprep.subr.mxu0 0.0
  %986 = vmatpush1.msra.mxu0 0.0
  %987 = vmatprep.subr.mxu0 0.0
  %988 = vmatpush1.msra.mxu0 0.0
  %989 = vmatprep.subr.mxu0 0.0
  %990 = vmatpush1.msra.mxu0 0.0
  %991 = vmatprep.subr.mxu0 0.0
  %992 = vmatpush1.msra.mxu0 0.0
  %993 = vmatprep.subr.mxu0 0.0
  %994 = vmatpush1.msra.mxu0 0.0
  %995 = vmatprep.subr.mxu0 0.0
  %996 = vmatpush1.msra.mxu0 0.0
  %997 = vmatprep.subr.mxu0 0.0
  %998 = vmatpush1.msra.mxu0 0.0
  %999 = vmatprep.subr.mxu0 0.0
  %1000 = vmatpush1.msra.mxu0 0.0
  %1001 = vmatprep.subr.mxu0 0.0
  %1002 = vmatpush1.msra.mxu0 0.0
  %1003 = vmatprep.subr.mxu0 0.0
  %1004 = vmatpush1.msra.mxu0 0.0
  %1005 = vmatprep.subr.mxu0 0.0
  %1006 = vmatpush1.msra.mxu0 0.0
  %1007 = vmatprep.subr.mxu0 0.0
  %1008 = vmatpush1.msra.mxu0 0.0
  %1009 = vmatprep.subr.mxu0 0.0
  %1010 = vmatpush1.msra.mxu0 0.0
  %1011 = vmatprep.subr.mxu0 0.0
  %1012 = vmatpush1.msra.mxu0 0.0
  %1013 = vmatprep.subr.mxu0 0.0
  %1014 = vmatpush1.msra.mxu0 0.0
  %1015 = vmatprep.subr.mxu0 0.0
  %1016 = vmatpush1.msra.mxu0 0.0
  %1017 = vmatprep.subr.mxu0 0.0
  %1018 = vmatpush1.msra.mxu0 0.0
  %1019 = vmatprep.subr.mxu0 0.0
  %1020 = vmatpush1.msra.mxu0 0.0
  %1021 = vmatprep.mubr.f32.mxu0 0.0
  %1022 = vmatmul.mubr.f32.gmra.mrb[0].mxu0 %v955
  %v1023 = vpop.f32.mrb[0].mxu0
  %v1024 = vadd.f32 0.0, %v1023
  %v1025 = vpop.f32.mrb[0].mxu0
  %1026 = vdwg.mxu0
  %1027 = vrot.lane.b32.xlu0 %v212, 64
  %v1028 = vpop.permute.xlu0 %1027
  %v1031 = vsel %vm231, %v927, 0
  %1033 = vmatprep.subr.mxu0 0.0
  %1034 = vmatpush1.msra.mxu0 %v1028
  %1035 = vmatprep.subr.mxu0 0.0
  %1036 = vmatpush1.msra.mxu0 0.0
  %1037 = vmatprep.subr.mxu0 0.0
  %1038 = vmatpush1.msra.mxu0 0.0
  %1039 = vmatprep.subr.mxu0 0.0
  %1040 = vmatpush1.msra.mxu0 0.0
  %1041 = vmatprep.subr.mxu0 0.0
  %1042 = vmatpush1.msra.mxu0 0.0
  %1043 = vmatprep.subr.mxu0 0.0
  %1044 = vmatpush1.msra.mxu0 0.0
  %1045 = vmatprep.subr.mxu0 0.0
  %1046 = vmatpush1.msra.mxu0 0.0
  %1047 = vmatprep.subr.mxu0 0.0
  %1048 = vmatpush1.msra.mxu0 0.0
  %1049 = vmatprep.subr.mxu0 0.0
  %1050 = vmatpush1.msra.mxu0 0.0
  %1051 = vmatprep.subr.mxu0 0.0
  %1052 = vmatpush1.msra.mxu0 0.0
  %1053 = vmatprep.subr.mxu0 0.0
  %1054 = vmatpush1.msra.mxu0 0.0
  %1055 = vmatprep.subr.mxu0 0.0
  %1056 = vmatpush1.msra.mxu0 0.0
  %1057 = vmatprep.subr.mxu0 0.0
  %1058 = vmatpush1.msra.mxu0 0.0
  %1059 = vmatprep.subr.mxu0 0.0
  %1060 = vmatpush1.msra.mxu0 0.0
  %1061 = vmatprep.subr.mxu0 0.0
  %1062 = vmatpush1.msra.mxu0 0.0
  %1063 = vmatprep.subr.mxu0 0.0
  %1064 = vmatpush1.msra.mxu0 0.0
  %1065 = vmatprep.subr.mxu0 0.0
  %1066 = vmatpush1.msra.mxu0 0.0
  %1067 = vmatprep.subr.mxu0 0.0
  %1068 = vmatpush1.msra.mxu0 0.0
  %1069 = vmatprep.subr.mxu0 0.0
  %1070 = vmatpush1.msra.mxu0 0.0
  %1071 = vmatprep.subr.mxu0 0.0
  %1072 = vmatpush1.msra.mxu0 0.0
  %1073 = vmatprep.subr.mxu0 0.0
  %1074 = vmatpush1.msra.mxu0 0.0
  %1075 = vmatprep.subr.mxu0 0.0
  %1076 = vmatpush1.msra.mxu0 0.0
  %1077 = vmatprep.subr.mxu0 0.0
  %1078 = vmatpush1.msra.mxu0 0.0
  %1079 = vmatprep.subr.mxu0 0.0
  %1080 = vmatpush1.msra.mxu0 0.0
  %1081 = vmatprep.subr.mxu0 0.0
  %1082 = vmatpush1.msra.mxu0 0.0
  %1083 = vmatprep.subr.mxu0 0.0
  %1084 = vmatpush1.msra.mxu0 0.0
  %1085 = vmatprep.subr.mxu0 0.0
  %1086 = vmatpush1.msra.mxu0 0.0
  %1087 = vmatprep.subr.mxu0 0.0
  %1088 = vmatpush1.msra.mxu0 0.0
  %1089 = vmatprep.subr.mxu0 0.0
  %1090 = vmatpush1.msra.mxu0 0.0
  %1091 = vmatprep.subr.mxu0 0.0
  %1092 = vmatpush1.msra.mxu0 0.0
  %1093 = vmatprep.subr.mxu0 0.0
  %1094 = vmatpush1.msra.mxu0 0.0
  %1095 = vmatprep.subr.mxu0 0.0
  %1096 = vmatpush1.msra.mxu0 0.0
  %1097 = vmatprep.mubr.f32.mxu0 0.0
  %1098 = vmatmul.mubr.f32.gmra.mrb[0].mxu0 %v1031
  %v1099 = vpop.f32.mrb[0].mxu0
  %v1100 = vadd.f32 0.0, %v1099
  %v1101 = vpop.f32.mrb[0].mxu0
  %1102 = vdwg.mxu0
  %1103 = vrot.lane.b32.xlu0 %v218, 64
  %v1104 = vpop.permute.xlu0 %1103
  %v1107 = vsel %vm231, %v928, 0
  %1109 = vmatprep.subr.mxu0 0.0
  %1110 = vmatpush1.msra.mxu0 %v1104
  %1111 = vmatprep.subr.mxu0 0.0
  %1112 = vmatpush1.msra.mxu0 0.0
  %1113 = vmatprep.subr.mxu0 0.0
  %1114 = vmatpush1.msra.mxu0 0.0
  %1115 = vmatprep.subr.mxu0 0.0
  %1116 = vmatpush1.msra.mxu0 0.0
  %1117 = vmatprep.subr.mxu0 0.0
  %1118 = vmatpush1.msra.mxu0 0.0
  %1119 = vmatprep.subr.mxu0 0.0
  %1120 = vmatpush1.msra.mxu0 0.0
  %1121 = vmatprep.subr.mxu0 0.0
  %1122 = vmatpush1.msra.mxu0 0.0
  %1123 = vmatprep.subr.mxu0 0.0
  %1124 = vmatpush1.msra.mxu0 0.0
  %1125 = vmatprep.subr.mxu0 0.0
  %1126 = vmatpush1.msra.mxu0 0.0
  %1127 = vmatprep.subr.mxu0 0.0
  %1128 = vmatpush1.msra.mxu0 0.0
  %1129 = vmatprep.subr.mxu0 0.0
  %1130 = vmatpush1.msra.mxu0 0.0
  %1131 = vmatprep.subr.mxu0 0.0
  %1132 = vmatpush1.msra.mxu0 0.0
  %1133 = vmatprep.subr.mxu0 0.0
  %1134 = vmatpush1.msra.mxu0 0.0
  %1135 = vmatprep.subr.mxu0 0.0
  %1136 = vmatpush1.msra.mxu0 0.0
  %1137 = vmatprep.subr.mxu0 0.0
  %1138 = vmatpush1.msra.mxu0 0.0
  %1139 = vmatprep.subr.mxu0 0.0
  %1140 = vmatpush1.msra.mxu0 0.0
  %1141 = vmatprep.subr.mxu0 0.0
  %1142 = vmatpush1.msra.mxu0 0.0
  %1143 = vmatprep.subr.mxu0 0.0
  %1144 = vmatpush1.msra.mxu0 0.0
  %1145 = vmatprep.subr.mxu0 0.0
  %1146 = vmatpush1.msra.mxu0 0.0
  %1147 = vmatprep.subr.mxu0 0.0
  %1148 = vmatpush1.msra.mxu0 0.0
  %1149 = vmatprep.subr.mxu0 0.0
  %1150 = vmatpush1.msra.mxu0 0.0
  %1151 = vmatprep.subr.mxu0 0.0
  %1152 = vmatpush1.msra.mxu0 0.0
  %1153 = vmatprep.subr.mxu0 0.0
  %1154 = vmatpush1.msra.mxu0 0.0
  %1155 = vmatprep.subr.mxu0 0.0
  %1156 = vmatpush1.msra.mxu0 0.0
  %1157 = vmatprep.subr.mxu0 0.0
  %1158 = vmatpush1.msra.mxu0 0.0
  %1159 = vmatprep.subr.mxu0 0.0
  %1160 = vmatpush1.msra.mxu0 0.0
  %1161 = vmatprep.subr.mxu0 0.0
  %1162 = vmatpush1.msra.mxu0 0.0
  %1163 = vmatprep.subr.mxu0 0.0
  %1164 = vmatpush1.msra.mxu0 0.0
  %1165 = vmatprep.subr.mxu0 0.0
  %1166 = vmatpush1.msra.mxu0 0.0
  %1167 = vmatprep.subr.mxu0 0.0
  %1168 = vmatpush1.msra.mxu0 0.0
  %1169 = vmatprep.subr.mxu0 0.0
  %1170 = vmatpush1.msra.mxu0 0.0
  %1171 = vmatprep.subr.mxu0 0.0
  %1172 = vmatpush1.msra.mxu0 0.0
  %1173 = vmatprep.mubr.f32.mxu0 0.0
  %1174 = vmatmul.mubr.f32.gmra.mrb[0].mxu0 %v1107
  %v1175 = vpop.f32.mrb[0].mxu0
  %v1176 = vadd.f32 0.0, %v1175
  %v1177 = vpop.f32.mrb[0].mxu0
  %1178 = vdwg.mxu0
  %1179 = vrot.lane.b32.xlu0 %v220, 64
  %v1180 = vpop.permute.xlu0 %1179
  %v1183 = vsel %vm231, %v929, 0
  %1185 = vmatprep.subr.mxu0 0.0
  %1186 = vmatpush1.msra.mxu0 %v1180
  %1187 = vmatprep.subr.mxu0 0.0
  %1188 = vmatpush1.msra.mxu0 0.0
  %1189 = vmatprep.subr.mxu0 0.0
  %1190 = vmatpush1.msra.mxu0 0.0
  %1191 = vmatprep.subr.mxu0 0.0
  %1192 = vmatpush1.msra.mxu0 0.0
  %1193 = vmatprep.subr.mxu0 0.0
  %1194 = vmatpush1.msra.mxu0 0.0
  %1195 = vmatprep.subr.mxu0 0.0
  %1196 = vmatpush1.msra.mxu0 0.0
  %1197 = vmatprep.subr.mxu0 0.0
  %1198 = vmatpush1.msra.mxu0 0.0
  %1199 = vmatprep.subr.mxu0 0.0
  %1200 = vmatpush1.msra.mxu0 0.0
  %1201 = vmatprep.subr.mxu0 0.0
  %1202 = vmatpush1.msra.mxu0 0.0
  %1203 = vmatprep.subr.mxu0 0.0
  %1204 = vmatpush1.msra.mxu0 0.0
  %1205 = vmatprep.subr.mxu0 0.0
  %1206 = vmatpush1.msra.mxu0 0.0
  %1207 = vmatprep.subr.mxu0 0.0
  %1208 = vmatpush1.msra.mxu0 0.0
  %1209 = vmatprep.subr.mxu0 0.0
  %1210 = vmatpush1.msra.mxu0 0.0
  %1211 = vmatprep.subr.mxu0 0.0
  %1212 = vmatpush1.msra.mxu0 0.0
  %1213 = vmatprep.subr.mxu0 0.0
  %1214 = vmatpush1.msra.mxu0 0.0
  %1215 = vmatprep.subr.mxu0 0.0
  %1216 = vmatpush1.msra.mxu0 0.0
  %1217 = vmatprep.subr.mxu0 0.0
  %1218 = vmatpush1.msra.mxu0 0.0
  %1219 = vmatprep.subr.mxu0 0.0
  %1220 = vmatpush1.msra.mxu0 0.0
  %1221 = vmatprep.subr.mxu0 0.0
  %1222 = vmatpush1.msra.mxu0 0.0
  %1223 = vmatprep.subr.mxu0 0.0
  %1224 = vmatpush1.msra.mxu0 0.0
  %1225 = vmatprep.subr.mxu0 0.0
  %1226 = vmatpush1.msra.mxu0 0.0
  %1227 = vmatprep.subr.mxu0 0.0
  %1228 = vmatpush1.msra.mxu0 0.0
  %1229 = vmatprep.subr.mxu0 0.0
  %1230 = vmatpush1.msra.mxu0 0.0
  %1231 = vmatprep.subr.mxu0 0.0
  %1232 = vmatpush1.msra.mxu0 0.0
  %1233 = vmatprep.subr.mxu0 0.0
  %1234 = vmatpush1.msra.mxu0 0.0
  %1235 = vmatprep.subr.mxu0 0.0
  %1236 = vmatpush1.msra.mxu0 0.0
  %1237 = vmatprep.subr.mxu0 0.0
  %1238 = vmatpush1.msra.mxu0 0.0
  %1239 = vmatprep.subr.mxu0 0.0
  %1240 = vmatpush1.msra.mxu0 0.0
  %1241 = vmatprep.subr.mxu0 0.0
  %1242 = vmatpush1.msra.mxu0 0.0
  %1243 = vmatprep.subr.mxu0 0.0
  %1244 = vmatpush1.msra.mxu0 0.0
  %1245 = vmatprep.subr.mxu0 0.0
  %1246 = vmatpush1.msra.mxu0 0.0
  %1247 = vmatprep.subr.mxu0 0.0
  %1248 = vmatpush1.msra.mxu0 0.0
  %1249 = vmatprep.mubr.f32.mxu0 0.0
  %1250 = vmatmul.mubr.f32.gmra.mrb[0].mxu0 %v1183
  %v1251 = vpop.f32.mrb[0].mxu0
  %v1252 = vadd.f32 0.0, %v1251
  %v1253 = vpop.f32.mrb[0].mxu0
  %1254 = vdwg.mxu0
  %1255 = vrot.lane.b32.xlu0 %v222, 64
  %v1256 = vpop.permute.xlu0 %1255
  %v1259 = vsel %vm231, %v930, 0
  %1261 = vmatprep.subr.mxu0 0.0
  %1262 = vmatpush1.msra.mxu0 %v1256
  %1263 = vmatprep.subr.mxu0 0.0
  %1264 = vmatpush1.msra.mxu0 0.0
  %1265 = vmatprep.subr.mxu0 0.0
  %1266 = vmatpush1.msra.mxu0 0.0
  %1267 = vmatprep.subr.mxu0 0.0
  %1268 = vmatpush1.msra.mxu0 0.0
  %1269 = vmatprep.subr.mxu0 0.0
  %1270 = vmatpush1.msra.mxu0 0.0
  %1271 = vmatprep.subr.mxu0 0.0
  %1272 = vmatpush1.msra.mxu0 0.0
  %1273 = vmatprep.subr.mxu0 0.0
  %1274 = vmatpush1.msra.mxu0 0.0
  %1275 = vmatprep.subr.mxu0 0.0
  %1276 = vmatpush1.msra.mxu0 0.0
  %1277 = vmatprep.subr.mxu0 0.0
  %1278 = vmatpush1.msra.mxu0 0.0
  %1279 = vmatprep.subr.mxu0 0.0
  %1280 = vmatpush1.msra.mxu0 0.0
  %1281 = vmatprep.subr.mxu0 0.0
  %1282 = vmatpush1.msra.mxu0 0.0
  %1283 = vmatprep.subr.mxu0 0.0
  %1284 = vmatpush1.msra.mxu0 0.0
  %1285 = vmatprep.subr.mxu0 0.0
  %1286 = vmatpush1.msra.mxu0 0.0
  %1287 = vmatprep.subr.mxu0 0.0
  %1288 = vmatpush1.msra.mxu0 0.0
  %1289 = vmatprep.subr.mxu0 0.0
  %1290 = vmatpush1.msra.mxu0 0.0
  %1291 = vmatprep.subr.mxu0 0.0
  %1292 = vmatpush1.msra.mxu0 0.0
  %1293 = vmatprep.subr.mxu0 0.0
  %1294 = vmatpush1.msra.mxu0 0.0
  %1295 = vmatprep.subr.mxu0 0.0
  %1296 = vmatpush1.msra.mxu0 0.0
  %1297 = vmatprep.subr.mxu0 0.0
  %1298 = vmatpush1.msra.mxu0 0.0
  %1299 = vmatprep.subr.mxu0 0.0
  %1300 = vmatpush1.msra.mxu0 0.0
  %1301 = vmatprep.subr.mxu0 0.0
  %1302 = vmatpush1.msra.mxu0 0.0
  %1303 = vmatprep.subr.mxu0 0.0
  %1304 = vmatpush1.msra.mxu0 0.0
  %1305 = vmatprep.subr.mxu0 0.0
  %1306 = vmatpush1.msra.mxu0 0.0
  %1307 = vmatprep.subr.mxu0 0.0
  %1308 = vmatpush1.msra.mxu0 0.0
  %1309 = vmatprep.subr.mxu0 0.0
  %1310 = vmatpush1.msra.mxu0 0.0
  %1311 = vmatprep.subr.mxu0 0.0
  %1312 = vmatpush1.msra.mxu0 0.0
  %1313 = vmatprep.subr.mxu0 0.0
  %1314 = vmatpush1.msra.mxu0 0.0
  %1315 = vmatprep.subr.mxu0 0.0
  %1316 = vmatpush1.msra.mxu0 0.0
  %1317 = vmatprep.subr.mxu0 0.0
  %1318 = vmatpush1.msra.mxu0 0.0
  %1319 = vmatprep.subr.mxu0 0.0
  %1320 = vmatpush1.msra.mxu0 0.0
  %1321 = vmatprep.subr.mxu0 0.0
  %1322 = vmatpush1.msra.mxu0 0.0
  %1323 = vmatprep.subr.mxu0 0.0
  %1324 = vmatpush1.msra.mxu0 0.0
  %1325 = vmatprep.mubr.f32.mxu0 0.0
  %1326 = vmatmul.mubr.f32.gmra.mrb[0].mxu0 %v1259
  %v1327 = vpop.f32.mrb[0].mxu0
  %v1328 = vadd.f32 0.0, %v1327
  %v1329 = vpop.f32.mrb[0].mxu0
  %1330 = vdwg.mxu0
  %1331 = vrot.lane.b32.xlu0 %v224, 64
  %v1332 = vpop.permute.xlu0 %1331
  %v1335 = vsel %vm231, %v931, 0
  %1337 = vmatprep.subr.mxu0 0.0
  %1338 = vmatpush1.msra.mxu0 %v1332
  %1339 = vmatprep.subr.mxu0 0.0
  %1340 = vmatpush1.msra.mxu0 0.0
  %1341 = vmatprep.subr.mxu0 0.0
  %1342 = vmatpush1.msra.mxu0 0.0
  %1343 = vmatprep.subr.mxu0 0.0
  %1344 = vmatpush1.msra.mxu0 0.0
  %1345 = vmatprep.subr.mxu0 0.0
  %1346 = vmatpush1.msra.mxu0 0.0
  %1347 = vmatprep.subr.mxu0 0.0
  %1348 = vmatpush1.msra.mxu0 0.0
  %1349 = vmatprep.subr.mxu0 0.0
  %1350 = vmatpush1.msra.mxu0 0.0
  %1351 = vmatprep.subr.mxu0 0.0
  %1352 = vmatpush1.msra.mxu0 0.0
  %1353 = vmatprep.subr.mxu0 0.0
  %1354 = vmatpush1.msra.mxu0 0.0
  %1355 = vmatprep.subr.mxu0 0.0
  %1356 = vmatpush1.msra.mxu0 0.0
  %1357 = vmatprep.subr.mxu0 0.0
  %1358 = vmatpush1.msra.mxu0 0.0
  %1359 = vmatprep.subr.mxu0 0.0
  %1360 = vmatpush1.msra.mxu0 0.0
  %1361 = vmatprep.subr.mxu0 0.0
  %1362 = vmatpush1.msra.mxu0 0.0
  %1363 = vmatprep.subr.mxu0 0.0
  %1364 = vmatpush1.msra.mxu0 0.0
  %1365 = vmatprep.subr.mxu0 0.0
  %1366 = vmatpush1.msra.mxu0 0.0
  %1367 = vmatprep.subr.mxu0 0.0
  %1368 = vmatpush1.msra.mxu0 0.0
  %1369 = vmatprep.subr.mxu0 0.0
  %1370 = vmatpush1.msra.mxu0 0.0
  %1371 = vmatprep.subr.mxu0 0.0
  %1372 = vmatpush1.msra.mxu0 0.0
  %1373 = vmatprep.subr.mxu0 0.0
  %1374 = vmatpush1.msra.mxu0 0.0
  %1375 = vmatprep.subr.mxu0 0.0
  %1376 = vmatpush1.msra.mxu0 0.0
  %1377 = vmatprep.subr.mxu0 0.0
  %1378 = vmatpush1.msra.mxu0 0.0
  %1379 = vmatprep.subr.mxu0 0.0
  %1380 = vmatpush1.msra.mxu0 0.0
  %1381 = vmatprep.subr.mxu0 0.0
  %1382 = vmatpush1.msra.mxu0 0.0
  %1383 = vmatprep.subr.mxu0 0.0
  %1384 = vmatpush1.msra.mxu0 0.0
  %1385 = vmatprep.subr.mxu0 0.0
  %1386 = vmatpush1.msra.mxu0 0.0
  %1387 = vmatprep.subr.mxu0 0.0
  %1388 = vmatpush1.msra.mxu0 0.0
  %1389 = vmatprep.subr.mxu0 0.0
  %1390 = vmatpush1.msra.mxu0 0.0
  %1391 = vmatprep.subr.mxu0 0.0
  %1392 = vmatpush1.msra.mxu0 0.0
  %1393 = vmatprep.subr.mxu0 0.0
  %1394 = vmatpush1.msra.mxu0 0.0
  %1395 = vmatprep.subr.mxu0 0.0
  %1396 = vmatpush1.msra.mxu0 0.0
  %1397 = vmatprep.subr.mxu0 0.0
  %1398 = vmatpush1.msra.mxu0 0.0
  %1399 = vmatprep.subr.mxu0 0.0
  %1400 = vmatpush1.msra.mxu0 0.0
  %1401 = vmatprep.mubr.f32.mxu0 0.0
  %1402 = vmatmul.mubr.f32.gmra.mrb[0].mxu0 %v1335
  %v1403 = vpop.f32.mrb[0].mxu0
  %v1404 = vadd.f32 0.0, %v1403
  %v1405 = vpop.f32.mrb[0].mxu0
  %1406 = vdwg.mxu0
  %1407 = vrot.lane.b32.xlu0 %v226, 64
  %v1408 = vpop.permute.xlu0 %1407
  %v1411 = vsel %vm231, %v932, 0
  %1413 = vmatprep.subr.mxu0 0.0
  %1414 = vmatpush1.msra.mxu0 %v1408
  %1415 = vmatprep.subr.mxu0 0.0
  %1416 = vmatpush1.msra.mxu0 0.0
  %1417 = vmatprep.subr.mxu0 0.0
  %1418 = vmatpush1.msra.mxu0 0.0
  %1419 = vmatprep.subr.mxu0 0.0
  %1420 = vmatpush1.msra.mxu0 0.0
  %1421 = vmatprep.subr.mxu0 0.0
  %1422 = vmatpush1.msra.mxu0 0.0
  %1423 = vmatprep.subr.mxu0 0.0
  %1424 = vmatpush1.msra.mxu0 0.0
  %1425 = vmatprep.subr.mxu0 0.0
  %1426 = vmatpush1.msra.mxu0 0.0
  %1427 = vmatprep.subr.mxu0 0.0
  %1428 = vmatpush1.msra.mxu0 0.0
  %1429 = vmatprep.subr.mxu0 0.0
  %1430 = vmatpush1.msra.mxu0 0.0
  %1431 = vmatprep.subr.mxu0 0.0
  %1432 = vmatpush1.msra.mxu0 0.0
  %1433 = vmatprep.subr.mxu0 0.0
  %1434 = vmatpush1.msra.mxu0 0.0
  %1435 = vmatprep.subr.mxu0 0.0
  %1436 = vmatpush1.msra.mxu0 0.0
  %1437 = vmatprep.subr.mxu0 0.0
  %1438 = vmatpush1.msra.mxu0 0.0
  %1439 = vmatprep.subr.mxu0 0.0
  %1440 = vmatpush1.msra.mxu0 0.0
  %1441 = vmatprep.subr.mxu0 0.0
  %1442 = vmatpush1.msra.mxu0 0.0
  %1443 = vmatprep.subr.mxu0 0.0
  %1444 = vmatpush1.msra.mxu0 0.0
  %1445 = vmatprep.subr.mxu0 0.0
  %1446 = vmatpush1.msra.mxu0 0.0
  %1447 = vmatprep.subr.mxu0 0.0
  %1448 = vmatpush1.msra.mxu0 0.0
  %1449 = vmatprep.subr.mxu0 0.0
  %1450 = vmatpush1.msra.mxu0 0.0
  %1451 = vmatprep.subr.mxu0 0.0
  %1452 = vmatpush1.msra.mxu0 0.0
  %1453 = vmatprep.subr.mxu0 0.0
  %1454 = vmatpush1.msra.mxu0 0.0
  %1455 = vmatprep.subr.mxu0 0.0
  %1456 = vmatpush1.msra.mxu0 0.0
  %1457 = vmatprep.subr.mxu0 0.0
  %1458 = vmatpush1.msra.mxu0 0.0
  %1459 = vmatprep.subr.mxu0 0.0
  %1460 = vmatpush1.msra.mxu0 0.0
  %1461 = vmatprep.subr.mxu0 0.0
  %1462 = vmatpush1.msra.mxu0 0.0
  %1463 = vmatprep.subr.mxu0 0.0
  %1464 = vmatpush1.msra.mxu0 0.0
  %1465 = vmatprep.subr.mxu0 0.0
  %1466 = vmatpush1.msra.mxu0 0.0
  %1467 = vmatprep.subr.mxu0 0.0
  %1468 = vmatpush1.msra.mxu0 0.0
  %1469 = vmatprep.subr.mxu0 0.0
  %1470 = vmatpush1.msra.mxu0 0.0
  %1471 = vmatprep.subr.mxu0 0.0
  %1472 = vmatpush1.msra.mxu0 0.0
  %1473 = vmatprep.subr.mxu0 0.0
  %1474 = vmatpush1.msra.mxu0 0.0
  %1475 = vmatprep.subr.mxu0 0.0
  %1476 = vmatpush1.msra.mxu0 0.0
  %1477 = vmatprep.mubr.f32.mxu0 0.0
  %1478 = vmatmul.mubr.f32.gmra.mrb[0].mxu0 %v1411
  %v1479 = vpop.f32.mrb[0].mxu0
  %v1480 = vadd.f32 0.0, %v1479
  %v1481 = vpop.f32.mrb[0].mxu0
  %1482 = vdwg.mxu0
  %1483 = vrot.lane.b32.xlu0 %v228, 64
  %v1484 = vpop.permute.xlu0 %1483
  %v1487 = vsel %vm231, %v933, 0
  %1489 = vmatprep.subr.mxu0 0.0
  %1490 = vmatpush1.msra.mxu0 %v1484
  %1491 = vmatprep.subr.mxu0 0.0
  %1492 = vmatpush1.msra.mxu0 0.0
  %1493 = vmatprep.subr.mxu0 0.0
  %1494 = vmatpush1.msra.mxu0 0.0
  %1495 = vmatprep.subr.mxu0 0.0
  %1496 = vmatpush1.msra.mxu0 0.0
  %1497 = vmatprep.subr.mxu0 0.0
  %1498 = vmatpush1.msra.mxu0 0.0
  %1499 = vmatprep.subr.mxu0 0.0
  %1500 = vmatpush1.msra.mxu0 0.0
  %1501 = vmatprep.subr.mxu0 0.0
  %1502 = vmatpush1.msra.mxu0 0.0
  %1503 = vmatprep.subr.mxu0 0.0
  %1504 = vmatpush1.msra.mxu0 0.0
  %1505 = vmatprep.subr.mxu0 0.0
  %1506 = vmatpush1.msra.mxu0 0.0
  %1507 = vmatprep.subr.mxu0 0.0
  %1508 = vmatpush1.msra.mxu0 0.0
  %1509 = vmatprep.subr.mxu0 0.0
  %1510 = vmatpush1.msra.mxu0 0.0
  %1511 = vmatprep.subr.mxu0 0.0
  %1512 = vmatpush1.msra.mxu0 0.0
  %1513 = vmatprep.subr.mxu0 0.0
  %1514 = vmatpush1.msra.mxu0 0.0
  %1515 = vmatprep.subr.mxu0 0.0
  %1516 = vmatpush1.msra.mxu0 0.0
  %1517 = vmatprep.subr.mxu0 0.0
  %1518 = vmatpush1.msra.mxu0 0.0
  %1519 = vmatprep.subr.mxu0 0.0
  %1520 = vmatpush1.msra.mxu0 0.0
  %1521 = vmatprep.subr.mxu0 0.0
  %1522 = vmatpush1.msra.mxu0 0.0
  %1523 = vmatprep.subr.mxu0 0.0
  %1524 = vmatpush1.msra.mxu0 0.0
  %1525 = vmatprep.subr.mxu0 0.0
  %1526 = vmatpush1.msra.mxu0 0.0
  %1527 = vmatprep.subr.mxu0 0.0
  %1528 = vmatpush1.msra.mxu0 0.0
  %1529 = vmatprep.subr.mxu0 0.0
  %1530 = vmatpush1.msra.mxu0 0.0
  %1531 = vmatprep.subr.mxu0 0.0
  %1532 = vmatpush1.msra.mxu0 0.0
  %1533 = vmatprep.subr.mxu0 0.0
  %1534 = vmatpush1.msra.mxu0 0.0
  %1535 = vmatprep.subr.mxu0 0.0
  %1536 = vmatpush1.msra.mxu0 0.0
  %1537 = vmatprep.subr.mxu0 0.0
  %1538 = vmatpush1.msra.mxu0 0.0
  %1539 = vmatprep.subr.mxu0 0.0
  %1540 = vmatpush1.msra.mxu0 0.0
  %1541 = vmatprep.subr.mxu0 0.0
  %1542 = vmatpush1.msra.mxu0 0.0
  %1543 = vmatprep.subr.mxu0 0.0
  %1544 = vmatpush1.msra.mxu0 0.0
  %1545 = vmatprep.subr.mxu0 0.0
  %1546 = vmatpush1.msra.mxu0 0.0
  %1547 = vmatprep.subr.mxu0 0.0
  %1548 = vmatpush1.msra.mxu0 0.0
  %1549 = vmatprep.subr.mxu0 0.0
  %1550 = vmatpush1.msra.mxu0 0.0
  %1551 = vmatprep.subr.mxu0 0.0
  %1552 = vmatpush1.msra.mxu0 0.0
  %1553 = vmatprep.mubr.f32.mxu0 0.0
  %1554 = vmatmul.mubr.f32.gmra.mrb[0].mxu0 %v1487
  %v1555 = vpop.f32.mrb[0].mxu0
  %v1556 = vadd.f32 0.0, %v1555
  %v1557 = vpop.f32.mrb[0].mxu0
  %1558 = vdwg.mxu0
  %1561 = vrot.lane.b32.xlu0 %v1176, 8
  %v1562 = vpop.permute.xlu0 %1561
  %1563 = vrot.lane.b32.xlu0 %v1252, 8
  %v1564 = vpop.permute.xlu0 %1563
  %1569 = vrot.lane.b32.xlu0 %v1328, 16
  %v1570 = vpop.permute.xlu0 %1569
  %1571 = vrot.lane.b32.xlu0 %v1404, 16
  %v1572 = vpop.permute.xlu0 %1571
  %1577 = vrot.lane.b32.xlu0 %v1480, 24
  %v1578 = vpop.permute.xlu0 %1577
  %1579 = vrot.lane.b32.xlu0 %v1556, 24
  %v1580 = vpop.permute.xlu0 %1579
  %v1583 = vsel %vm231, %v1024, %v1562
  %v1584 = vsel %vm231, %v1100, %v1564
  %vm1585 = vcmask 130048
  %v1586 = vsel %vm1585, %v1583, %v1570
  %v1587 = vsel %vm1585, %v1584, %v1572
  %vm1588 = vcmask 195584
  %v1589 = vsel %vm1588, %v1586, %v1578
  %v1590 = vsel %vm1588, %v1587, %v1580
  %v1591 = vld [vmem:[%s2 + $0x10] sm:$0xff]
  %v1592 = vld [vmem:[%s2 + $0x28] sm:$0xff]
  %v1593 = vld [vmem:[%s2 + $0x40] sm:$0xff]
  %v1594 = vld [vmem:[%s2 + $0x58] sm:$0xff]
  %v1595 = vld [vmem:[%s4 + $0x1] sm:$0x1]
  %v1596 = vlaneseq
  %v1597 = vshrl.u32 %v1596, 7
  %v1598 = vsub.s32 0, %v1597
  %v1599 = vrot.slane %v1595, %v1598
  %v1601 = vsel %vm73, %v1589, 0
  %v1604 = vsel %vm73, %v1590, 0
  %1606 = vmatprep.subr.mxu0 0.0
  %1607 = vmatpush1.msra.mxu0 %v1591
  %1608 = vmatprep.subr.mxu0 0.0
  %1609 = vmatpush1.msra.mxu0 %v1592
  %1610 = vmatprep.subr.mxu0 0.0
  %1611 = vmatpush1.msra.mxu0 %v1593
  %1612 = vmatprep.subr.mxu0 0.0
  %1613 = vmatpush1.msra.mxu0 %v1594
  %1614 = vmatprep.subr.mxu0 0.0
  %1615 = vmatpush1.msra.mxu0 0.0
  %1616 = vmatprep.subr.mxu0 0.0
  %1617 = vmatpush1.msra.mxu0 0.0
  %1618 = vmatprep.subr.mxu0 0.0
  %1619 = vmatpush1.msra.mxu0 0.0
  %1620 = vmatprep.subr.mxu0 0.0
  %1621 = vmatpush1.msra.mxu0 0.0
  %1622 = vmatprep.subr.mxu0 0.0
  %1623 = vmatpush1.msra.mxu0 0.0
  %1624 = vmatprep.subr.mxu0 0.0
  %1625 = vmatpush1.msra.mxu0 0.0
  %1626 = vmatprep.subr.mxu0 0.0
  %1627 = vmatpush1.msra.mxu0 0.0
  %1628 = vmatprep.subr.mxu0 0.0
  %1629 = vmatpush1.msra.mxu0 0.0
  %1630 = vmatprep.subr.mxu0 0.0
  %1631 = vmatpush1.msra.mxu0 0.0
  %1632 = vmatprep.subr.mxu0 0.0
  %1633 = vmatpush1.msra.mxu0 0.0
  %1634 = vmatprep.subr.mxu0 0.0
  %1635 = vmatpush1.msra.mxu0 0.0
  %1636 = vmatprep.subr.mxu0 0.0
  %1637 = vmatpush1.msra.mxu0 0.0
  %1638 = vmatprep.subr.mxu0 0.0
  %1639 = vmatpush1.msra.mxu0 0.0
  %1640 = vmatprep.subr.mxu0 0.0
  %1641 = vmatpush1.msra.mxu0 0.0
  %1642 = vmatprep.subr.mxu0 0.0
  %1643 = vmatpush1.msra.mxu0 0.0
  %1644 = vmatprep.subr.mxu0 0.0
  %1645 = vmatpush1.msra.mxu0 0.0
  %1646 = vmatprep.subr.mxu0 0.0
  %1647 = vmatpush1.msra.mxu0 0.0
  %1648 = vmatprep.subr.mxu0 0.0
  %1649 = vmatpush1.msra.mxu0 0.0
  %1650 = vmatprep.subr.mxu0 0.0
  %1651 = vmatpush1.msra.mxu0 0.0
  %1652 = vmatprep.subr.mxu0 0.0
  %1653 = vmatpush1.msra.mxu0 0.0
  %1654 = vmatprep.subr.mxu0 0.0
  %1655 = vmatpush1.msra.mxu0 0.0
  %1656 = vmatprep.subr.mxu0 0.0
  %1657 = vmatpush1.msra.mxu0 0.0
  %1658 = vmatprep.subr.mxu0 0.0
  %1659 = vmatpush1.msra.mxu0 0.0
  %1660 = vmatprep.subr.mxu0 0.0
  %1661 = vmatpush1.msra.mxu0 0.0
  %1662 = vmatprep.subr.mxu0 0.0
  %1663 = vmatpush1.msra.mxu0 0.0
  %1664 = vmatprep.subr.mxu0 0.0
  %1665 = vmatpush1.msra.mxu0 0.0
  %1666 = vmatprep.subr.mxu0 0.0
  %1667 = vmatpush1.msra.mxu0 0.0
  %1668 = vmatprep.subr.mxu0 0.0
  %1669 = vmatpush1.msra.mxu0 0.0
  %1670 = vmatprep.mubr.f32.mxu0 0.0
  %1671 = vmatmul.mubr.f32.gmra.mrb[0].mxu0 %v1601
  %v1672 = vpop.f32.mrb[0].mxu0
  %v1673 = vadd.f32 %v1599, %v1672
  %v1674 = vpop.f32.mrb[0].mxu0
  %1675 = vmatprep.mubr.f32.mxu0 0.0
  %1676 = vmatmul.mubr.f32.gmra.mrb[0].mxu0 %v1604
  %v1677 = vpop.f32.mrb[0].mxu0
  %v1678 = vadd.f32 %v1599, %v1677
  %v1679 = vpop.f32.mrb[0].mxu0
  %1680 = vdwg.mxu0
  %v1681 = vadd.f32 %v22, %v1673
  %v1682 = vadd.f32 %v23, %v1678
  %v1683 = vld [vmem:[%s4 + $0x2] sm:$0x1]
  %v1684 = vld [vmem:[%s4 + $0x3] sm:$0x1]
  %v1685 = vsel %vm73, %v1681, 0.0
  %1686 = vadd.xlane.f32.xlu0 %v1685
  %v1687 = vpop.xlane.xlu0 %1686
  %v1688 = vsel %vm73, %v1682, 0.0
  %1689 = vadd.xlane.f32.xlu0 %v1688
  %v1690 = vpop.xlane.xlu0 %1689
  %v1691 = vmul.f32 %v1687, %v80
  %v1692 = vmul.f32 %v1690, %v80
  %v1693 = vsub.f32 %v1681, %v1691
  %v1694 = vsub.f32 %v1682, %v1692
  %v1695 = vmul.f32 %v1693, %v1693
  %v1696 = vmul.f32 %v1694, %v1694
  %v1697 = vsel %vm73, %v1695, 0.0
  %1698 = vadd.xlane.f32.xlu0 %v1697
  %v1699 = vpop.xlane.xlu0 %1698
  %v1700 = vsel %vm73, %v1696, 0.0
  %1701 = vadd.xlane.f32.xlu0 %v1700
  %v1702 = vpop.xlane.xlu0 %1701
  %v1703 = vmul.f32 %v1699, %v80
  %v1704 = vmul.f32 %v1702, %v80
  %v1705 = vadd.f32 %v1703, 1e-05
  %v1706 = vadd.f32 %v1704, 1e-05
  %v1707 = vrsqrt.pop %v1705
  %v1708 = vrsqrt.pop %v1706
  %v1709 = vmul.f32 %v1693, %v1707
  %v1710 = vmul.f32 %v1694, %v1708
  %v1711 = vlaneseq
  %v1712 = vshrl.u32 %v1711, 7
  %v1713 = vsub.s32 0, %v1712
  %v1714 = vrot.slane %v1683, %v1713
  %v1715 = vmul.f32 %v1709, %v1714
  %v1716 = vmul.f32 %v1710, %v1714
  %v1717 = vlaneseq
  %v1718 = vshrl.u32 %v1717, 7
  %v1719 = vsub.s32 0, %v1718
  %v1720 = vrot.slane %v1684, %v1719
  %v1721 = vadd.f32 %v1715, %v1720
  %v1722 = vadd.f32 %v1716, %v1720
  %v1723 = vld [vmem:[%s2] sm:$0xff]
  %v1724 = vld [vmem:[%s2 + $0x18] sm:$0xff]
  %v1725 = vld [vmem:[%s2 + $0x30] sm:$0xff]
  %v1726 = vld [vmem:[%s2 + $0x48] sm:$0xff]
  %v1727 = vld [vmem:[%s4 + $0x4] sm:$0x1]
  %v1728 = vlaneseq
  %v1729 = vshrl.u32 %v1728, 7
  %v1730 = vsub.s32 0, %v1729
  %v1731 = vrot.slane %v1727, %v1730
  %v1733 = vsel %vm73, %v1721, 0
  %v1736 = vsel %vm73, %v1722, 0
  %1738 = vmatprep.subr.mxu0 0.0
  %1739 = vmatpush1.msra.mxu0 %v1723
  %1740 = vmatprep.subr.mxu0 0.0
  %1741 = vmatpush1.msra.mxu0 %v1724
  %1742 = vmatprep.subr.mxu0 0.0
  %1743 = vmatpush1.msra.mxu0 %v1725
  %1744 = vmatprep.subr.mxu0 0.0
  %1745 = vmatpush1.msra.mxu0 %v1726
  %1746 = vmatprep.subr.mxu0 0.0
  %1747 = vmatpush1.msra.mxu0 0.0
  %1748 = vmatprep.subr.mxu0 0.0
  %1749 = vmatpush1.msra.mxu0 0.0
  %1750 = vmatprep.subr.mxu0 0.0
  %1751 = vmatpush1.msra.mxu0 0.0
  %1752 = vmatprep.subr.mxu0 0.0
  %1753 = vmatpush1.msra.mxu0 0.0
  %1754 = vmatprep.subr.mxu0 0.0
  %1755 = vmatpush1.msra.mxu0 0.0
  %1756 = vmatprep.subr.mxu0 0.0
  %1757 = vmatpush1.msra.mxu0 0.0
  %1758 = vmatprep.subr.mxu0 0.0
  %1759 = vmatpush1.msra.mxu0 0.0
  %1760 = vmatprep.subr.mxu0 0.0
  %1761 = vmatpush1.msra.mxu0 0.0
  %1762 = vmatprep.subr.mxu0 0.0
  %1763 = vmatpush1.msra.mxu0 0.0
  %1764 = vmatprep.subr.mxu0 0.0
  %1765 = vmatpush1.msra.mxu0 0.0
  %1766 = vmatprep.subr.mxu0 0.0
  %1767 = vmatpush1.msra.mxu0 0.0
  %1768 = vmatprep.subr.mxu0 0.0
  %1769 = vmatpush1.msra.mxu0 0.0
  %1770 = vmatprep.subr.mxu0 0.0
  %1771 = vmatpush1.msra.mxu0 0.0
  %1772 = vmatprep.subr.mxu0 0.0
  %1773 = vmatpush1.msra.mxu0 0.0
  %1774 = vmatprep.subr.mxu0 0.0
  %1775 = vmatpush1.msra.mxu0 0.0
  %1776 = vmatprep.subr.mxu0 0.0
  %1777 = vmatpush1.msra.mxu0 0.0
  %1778 = vmatprep.subr.mxu0 0.0
  %1779 = vmatpush1.msra.mxu0 0.0
  %1780 = vmatprep.subr.mxu0 0.0
  %1781 = vmatpush1.msra.mxu0 0.0
  %1782 = vmatprep.subr.mxu0 0.0
  %1783 = vmatpush1.msra.mxu0 0.0
  %1784 = vmatprep.subr.mxu0 0.0
  %1785 = vmatpush1.msra.mxu0 0.0
  %1786 = vmatprep.subr.mxu0 0.0
  %1787 = vmatpush1.msra.mxu0 0.0
  %1788 = vmatprep.subr.mxu0 0.0
  %1789 = vmatpush1.msra.mxu0 0.0
  %1790 = vmatprep.subr.mxu0 0.0
  %1791 = vmatpush1.msra.mxu0 0.0
  %1792 = vmatprep.subr.mxu0 0.0
  %1793 = vmatpush1.msra.mxu0 0.0
  %1794 = vmatprep.subr.mxu0 0.0
  %1795 = vmatpush1.msra.mxu0 0.0
  %1796 = vmatprep.subr.mxu0 0.0
  %1797 = vmatpush1.msra.mxu0 0.0
  %1798 = vmatprep.subr.mxu0 0.0
  %1799 = vmatpush1.msra.mxu0 0.0
  %1800 = vmatprep.subr.mxu0 0.0
  %1801 = vmatpush1.msra.mxu0 0.0
  %1802 = vmatprep.mubr.f32.mxu0 0.0
  %1803 = vmatmul.mubr.f32.gmra.mrb[0].mxu0 %v1733
  %v1804 = vpop.f32.mrb[0].mxu0
  %v1805 = vadd.f32 %v1731, %v1804
  %v1806 = vpop.f32.mrb[0].mxu0
  %1807 = vmatprep.mubr.f32.mxu0 0.0
  %1808 = vmatmul.mubr.f32.gmra.mrb[0].mxu0 %v1736
  %v1809 = vpop.f32.mrb[0].mxu0
  %v1810 = vadd.f32 %v1731, %v1809
  %v1811 = vpop.f32.mrb[0].mxu0
  %1812 = vdwg.mxu0
  %v1813 = vmul.f32 %v1805, 0.5
  %v1814 = vmul.f32 %v1810, 0.5
  %v1815 = vmul.f32 %v1805, 0.70710677
  %v1816 = vmul.f32 %v1810, 0.70710677
  %v1817 = verf.f32.pop %v1815
  %v1818 = verf.f32.pop %v1816
  %v1819 = vadd.f32 %v1817, 1.0
  %v1820 = vadd.f32 %v1818, 1.0
  %v1821 = vmul.f32 %v1813, %v1819
  %v1822 = vmul.f32 %v1814, %v1820
  %v1823 = vld [vmem:[%s4 + $0x5] sm:$0x1]
  %v1824 = vld [vmem:[%s3] sm:$0xff]
  %v1825 = vld [vmem:[%s3 + $0x8] sm:$0xff]
  %v1826 = vld [vmem:[%s3 + $0x10] sm:$0xff]
  %v1827 = vld [vmem:[%s3 + $0x18] sm:$0xff]
  %v1828 = vld [vmem:[%s3 + $0x20] sm:$0xff]
  %v1829 = vld [vmem:[%s3 + $0x28] sm:$0xff]
  %v1830 = vld [vmem:[%s3 + $0x30] sm:$0xff]
  %v1831 = vld [vmem:[%s3 + $0x38] sm:$0xff]
  %v1832 = vld [vmem:[%s3 + $0x40] sm:$0xff]
  %v1833 = vld [vmem:[%s3 + $0x48] sm:$0xff]
  %v1834 = vld [vmem:[%s3 + $0x50] sm:$0xff]
  %v1835 = vld [vmem:[%s3 + $0x58] sm:$0xff]
  %v1836 = vld [vmem:[%s3 + $0x60] sm:$0xff]
  %v1837 = vld [vmem:[%s3 + $0x68] sm:$0xff]
  %v1838 = vld [vmem:[%s3 + $0x70] sm:$0xff]
  %v1839 = vld [vmem:[%s3 + $0x78] sm:$0xff]
  %v1840 = vlaneseq
  %v1841 = vshrl.u32 %v1840, 7
  %v1842 = vsub.s32 0, %v1841
  %v1843 = vrot.slane %v1823, %v1842
  %1844 = vmatprep.subr.mxu0 0.0
  %1845 = vmatpush1.msra.mxu0 %v1824
  %1846 = vmatprep.subr.mxu0 0.0
  %1847 = vmatpush1.msra.mxu0 %v1825
  %1848 = vmatprep.subr.mxu0 0.0
  %1849 = vmatpush1.msra.mxu0 %v1826
  %1850 = vmatprep.subr.mxu0 0.0
  %1851 = vmatpush1.msra.mxu0 %v1827
  %1852 = vmatprep.subr.mxu0 0.0
  %1853 = vmatpush1.msra.mxu0 %v1828
  %1854 = vmatprep.subr.mxu0 0.0
  %1855 = vmatpush1.msra.mxu0 %v1829
  %1856 = vmatprep.subr.mxu0 0.0
  %1857 = vmatpush1.msra.mxu0 %v1830
  %1858 = vmatprep.subr.mxu0 0.0
  %1859 = vmatpush1.msra.mxu0 %v1831
  %1860 = vmatprep.subr.mxu0 0.0
  %1861 = vmatpush1.msra.mxu0 %v1832
  %1862 = vmatprep.subr.mxu0 0.0
  %1863 = vmatpush1.msra.mxu0 %v1833
  %1864 = vmatprep.subr.mxu0 0.0
  %1865 = vmatpush1.msra.mxu0 %v1834
  %1866 = vmatprep.subr.mxu0 0.0
  %1867 = vmatpush1.msra.mxu0 %v1835
  %1868 = vmatprep.subr.mxu0 0.0
  %1869 = vmatpush1.msra.mxu0 %v1836
  %1870 = vmatprep.subr.mxu0 0.0
  %1871 = vmatpush1.msra.mxu0 %v1837
  %1872 = vmatprep.subr.mxu0 0.0
  %1873 = vmatpush1.msra.mxu0 %v1838
  %1874 = vmatprep.subr.mxu0 0.0
  %1875 = vmatpush1.msra.mxu0 %v1839
  %1876 = vmatprep.subr.mxu0 0.0
  %1877 = vmatpush1.msra.mxu0 0.0
  %1878 = vmatprep.subr.mxu0 0.0
  %1879 = vmatpush1.msra.mxu0 0.0
  %1880 = vmatprep.subr.mxu0 0.0
  %1881 = vmatpush1.msra.mxu0 0.0
  %1882 = vmatprep.subr.mxu0 0.0
  %1883 = vmatpush1.msra.mxu0 0.0
  %1884 = vmatprep.subr.mxu0 0.0
  %1885 = vmatpush1.msra.mxu0 0.0
  %1886 = vmatprep.subr.mxu0 0.0
  %1887 = vmatpush1.msra.mxu0 0.0
  %1888 = vmatprep.subr.mxu0 0.0
  %1889 = vmatpush1.msra.mxu0 0.0
  %1890 = vmatprep.subr.mxu0 0.0
  %1891 = vmatpush1.msra.mxu0 0.0
  %1892 = vmatprep.subr.mxu0 0.0
  %1893 = vmatpush1.msra.mxu0 0.0
  %1894 = vmatprep.subr.mxu0 0.0
  %1895 = vmatpush1.msra.mxu0 0.0
  %1896 = vmatprep.subr.mxu0 0.0
  %1897 = vmatpush1.msra.mxu0 0.0
  %1898 = vmatprep.subr.mxu0 0.0
  %1899 = vmatpush1.msra.mxu0 0.0
  %1900 = vmatprep.subr.mxu0 0.0
  %1901 = vmatpush1.msra.mxu0 0.0
  %1902 = vmatprep.subr.mxu0 0.0
  %1903 = vmatpush1.msra.mxu0 0.0
  %1904 = vmatprep.subr.mxu0 0.0
  %1905 = vmatpush1.msra.mxu0 0.0
  %1906 = vmatprep.subr.mxu0 0.0
  %1907 = vmatpush1.msra.mxu0 0.0
  %1908 = vmatprep.mubr.f32.mxu0 0.0
  %1909 = vmatmul.mubr.f32.gmra.mrb[0].mxu0 %v1821
  %v1910 = vpop.f32.mrb[0].mxu0
  %v1911 = vadd.f32 %v1843, %v1910
  %v1912 = vpop.f32.mrb[0].mxu0
  %1913 = vmatprep.mubr.f32.mxu0 0.0
  %1914 = vmatmul.mubr.f32.gmra.mrb[0].mxu0 %v1822
  %v1915 = vpop.f32.mrb[0].mxu0
  %v1916 = vadd.f32 %v1843, %v1915
  %v1917 = vpop.f32.mrb[0].mxu0
  %1918 = vdwg.mxu0
  %v1919 = vadd.f32 %v1681, %v1911
  %v1920 = vadd.f32 %v1682, %v1916
  %v1922 = vrot.slane %v1919, 4
  %1923 = vrot.lane.b32.xlu0 %v1922, 32
  %v1924 = vpop.permute.xlu0 %1923
  %1927 = vrot.lane.b32.xlu0 %v1920, 64
  %v1928 = vpop.permute.xlu0 %1927
  %v1930 = vrot.slane %v1920, 4
  %1931 = vrot.lane.b32.xlu0 %v1930, 96
  %v1932 = vpop.permute.xlu0 %1931
  %v1934 = vsel %vm73, %v1919, %v1924
  %vm1935 = vcmask 523264
  %v1936 = vsel %vm1935, %v1934, %v1928
  %vm1937 = vcmask 785408
  %v1938 = vsel %vm1937, %v1936, %v1932
  %1939 = vst [vmem:[%s5] sm:$0xf] %v1938
  %1941 = vrot.lane.b32.xlu0 %v950, 8
  %v1942 = vpop.permute.xlu0 %1941
  %v1944 = vsel %vm231, %v949, %v1942
  %v1946 = vrot.slane %v1944, 1
  %1947 = vrot.lane.b32.xlu0 %v1946, 16
  %v1948 = vpop.permute.xlu0 %1947
  %v1950 = vrot.slane %v1944, 2
  %1951 = vrot.lane.b32.xlu0 %v1950, 32
  %v1952 = vpop.permute.xlu0 %1951
  %v1954 = vrot.slane %v1944, 3
  %1955 = vrot.lane.b32.xlu0 %v1954, 48
  %v1956 = vpop.permute.xlu0 %1955
  %v1958 = vrot.slane %v1944, 4
  %1959 = vrot.lane.b32.xlu0 %v1958, 64
  %v1960 = vpop.permute.xlu0 %1959
  %v1962 = vrot.slane %v1944, 5
  %1963 = vrot.lane.b32.xlu0 %v1962, 80
  %v1964 = vpop.permute.xlu0 %1963
  %v1966 = vrot.slane %v1944, 6
  %1967 = vrot.lane.b32.xlu0 %v1966, 96
  %v1968 = vpop.permute.xlu0 %1967
  %v1970 = vrot.slane %v1944, 7
  %1971 = vrot.lane.b32.xlu0 %v1970, 112
  %v1972 = vpop.permute.xlu0 %1971
  %v1974 = vsel %vm1585, %v1944, %v1948
  %v1975 = vsel %vm73, %v1974, %v1952
  %vm1976 = vcmask 392192
  %v1977 = vsel %vm1976, %v1975, %v1956
  %v1978 = vsel %vm1935, %v1977, %v1960
  %vm1979 = vcmask 654336
  %v1980 = vsel %vm1979, %v1978, %v1964
  %v1981 = vsel %vm1937, %v1980, %v1968
  %vm1982 = vcmask 916480
  %v1983 = vsel %vm1982, %v1981, %v1972
  %1984 = vst [vmem:[%s6] sm:$0x1] %v1983
  // Predicated region
  $region22: #{encoder_block.1} parent=0 // pred_check
    _
  $region23: #{encoder_block.1} parent=0 // pred_check_branch
    %1986 = sbr.rel (0) target = $region25
  $region24: #{encoder_block.1} parent=0 // pred_region
    _
  $region25: #{encoder_block.1} parent=0 // pred_fallthru
    _
  // Predicated region
  $region26: #{encoder_block.1} parent=0 // pred_check
    _
  $region27: #{encoder_block.1} parent=0 // pred_check_branch
    %1988 = sbr.rel (0) target = $region29
  $region28: #{encoder_block.1} parent=0 // pred_region
    _
  $region29: #{encoder_block.1} parent=0 // pred_fallthru
    _
  // Predicated region
  $region30: #{encoder_block.1} parent=0 // pred_check
    _
  $region31: #{encoder_block.1} parent=0 // pred_check_branch
    %1990 = sbr.rel (0) target = $region33
  $region32: #{encoder_block.1} parent=0 // pred_region
    _
  $region33: #{encoder_block.1} parent=0 // pred_fallthru
    _
  // Predicated region
  $region34: #{encoder_block.1} parent=0 // pred_check
    _
  $region35: #{encoder_block.1} parent=0 // pred_check_branch
    %1992 = sbr.rel (0) target = $region37
  $region36: #{encoder_block.1} parent=0 // pred_region
    _
  $region37: #{encoder_block.1} parent=0 // pred_fallthru
    _

</llo_original>
